<compile_context>
chip_gen: v6e
topology: v6e:2x2x1
jax: 0.10.0
libtpu: 0.0.40
codegen_flags: <defaults>
</compile_context>

<pallas_src>
import numpy as np
import jax
import jax.numpy as jnp
from jax import lax
from jax.experimental import pallas as pl
from jax.experimental.pallas import tpu as pltpu

QDIM = 4        # number of links / generalized coordinates
LANES = 128     # TPU lane width (batch maps onto lanes)
CHUNK = 8       # sublane rows per chunk -> each value is exactly one vreg
UNROLL = 2      # independent chunks per fori_loop body


# ---------------------------------------------------------------------------
# Pallas kernel
# ---------------------------------------------------------------------------
def acrobot_kernel(mconst_ref, ccoef_ref, w_ref, tau_ref,   # SMEM scalar tables
                   x_ref,                                   # (3n, tile_r, 128) VMEM
                   out_ref):                                # (n,  tile_r, 128) VMEM
    n = QDIM
    tile_r = x_ref.shape[1]
    pairs = [(s, t) for s in range(n) for t in range(s + 1, n)]

    # Scalar constants (read once from SMEM, reused for every chunk).
    Mc = [[mconst_ref[i * n + j] for j in range(n)] for i in range(n)]
    Cc = [[ccoef_ref[i * n + j] for j in range(n)] for i in range(n)]
    wv = [w_ref[p] for p in range(n)]
    taus = [tau_ref[i] for i in range(n)]

    # Hoisted diagonal splats: built ONCE per kernel invocation, not per chunk.
    diag = [jnp.full((CHUNK, LANES), Mc[i][i], dtype=jnp.float32)
            for i in range(n)]

    def process_chunk(c):
        if isinstance(c, int):
            row = c * CHUNK
        else:
            row = pl.multiple_of(c * CHUNK, CHUNK)
        sl = pl.ds(row, CHUNK)
        q = [x_ref[i, sl, :] for i in range(n)]
        v = [x_ref[n + i, sl, :] for i in range(n)]
        u = [x_ref[2 * n + i, sl, :] for i in range(n)]

        # Cumulative angles Theta_p = sum_{m<=p} q_m and cumulative velocities.
        Th = [q[0]]
        Vc = [v[0]]
        for i in range(1, n):
            Th.append(Th[i - 1] + q[i])
            Vc.append(Vc[i - 1] + v[i])
        cT = [jnp.cos(t) for t in Th]      # only 2*n transcendentals per chunk
        sT = [jnp.sin(t) for t in Th]

        # Pairwise relative-angle trig via angle-difference identities:
        #   theta_st = Theta_t - Theta_s   (s < t)
        Moff, P, dV, Q = {}, {}, {}, {}
        for (s, t) in pairs:
            cos_st = cT[t] * cT[s] + sT[t] * sT[s]
            sin_st = sT[t] * cT[s] - cT[t] * sT[s]
            Moff[(s, t)] = Mc[s][t] + Cc[s][t] * cos_st     # M off-diagonal
            P[(s, t)] = Cc[s][t] * sin_st                   # Ccoef * sin(theta)
            dV[(s, t)] = Vc[t] - Vc[s]                      # sum_{s<l<=t} v_l
            Q[(s, t)] = P[(s, t)] * v[s] * v[t]

        # Coriolis force:
        #   Cv_i = sum_{j,l} dM_ij/dq_l v_j v_l - 0.5 sum_{j,l} dM_jl/dq_i v_j v_l
        # with dM_ij/dq_l = -Ccoef_ij sin(theta_ij) [min(i,j) < l <= max(i,j)].
        Cv = []
        for i in range(n):
            t1 = None
            for j in range(n):
                if j == i:
                    continue
                key = (i, j) if i < j else (j, i)
                contrib = P[key] * v[j] * dV[key]
                t1 = contrib if t1 is None else t1 + contrib
            cv_i = -t1
            for (s, t) in pairs:
                if s < i <= t:
                    cv_i = cv_i + Q[(s, t)]
            Cv.append(cv_i)

        # Gravity / potential gradient: G_l = sum_{p>=l} w_p sin(Theta_p).
        G = [None] * n
        acc = wv[n - 1] * sT[n - 1]
        G[n - 1] = acc
        for l in range(n - 2, -1, -1):
            acc = acc + wv[l] * sT[l]
            G[l] = acc

        # rhs = F - Cv - G   with  F = diag(taus) @ u
        b = [taus[i] * u[i] - Cv[i] - G[i] for i in range(n)]

        # --- per-lane unrolled LDL^T solve of  M x = b  (M is 4x4 SPD) -------
        def A(i, j):
            if i == j:
                return diag[i]                       # hoisted splat
            key = (i, j) if i < j else (j, i)
            return Moff[key]

        L = [[None] * n for _ in range(n)]
        W = [[None] * n for _ in range(n)]   # W[i][j] = L[i][j] * D[j]
        R = [None] * n                       # R[j] = 1 / D[j]
        for j in range(n):
            dj = A(j, j)
            for k in range(j):
                dj = dj - L[j][k] * W[j][k]
            r = pl.reciprocal(dj, approx=True)       # EUP slot (otherwise idle)
            R[j] = r * (2.0 - dj * r)                # one Newton refinement
            for i in range(j + 1, n):
                wij = A(i, j)
                for k in range(j):
                    wij = wij - L[i][k] * W[j][k]
                W[i][j] = wij
                L[i][j] = wij * R[j]

        # forward solve  L y = b
        y = [None] * n
        for i in range(n):
            yi = b[i]
            for k in range(i):
                yi = yi - L[i][k] * y[k]
            y[i] = yi
        # diagonal + back solve  L^T x = D^{-1} y
        xs = [None] * n
        for i in range(n - 1, -1, -1):
            xi = y[i] * R[i]
            for k in range(i + 1, n):
                xi = xi - L[k][i] * xs[k]
            xs[i] = xi

        for i in range(n):
            out_ref[i, sl, :] = xs[i]        # unmasked, lane-dense stores

    # Chunk loop: bounded live ranges via fori_loop; UNROLL independent chunks
    # per body give the scheduler two interleavable dependency chains.
    n_chunks = tile_r // CHUNK
    if n_chunks <= 2 * UNROLL:
        for c in range(n_chunks):
            process_chunk(c)
    else:
        n_steps = n_chunks // UNROLL
        rem = n_chunks - n_steps * UNROLL

        def body(s, carry):
            base = s * UNROLL
            for k in range(UNROLL):
                process_chunk(base + k)
            return carry

        lax.fori_loop(0, n_steps, body, 0)
        for k in range(rem):                 # static tail (at most UNROLL-1)
            process_chunk(n_steps * UNROLL + k)


# ---------------------------------------------------------------------------
# Wrappers
# ---------------------------------------------------------------------------
def _acrobot_pallas(xk, consts, tile_r):
    """Lane-major entry point.

    xk: (3*QDIM, R, 128) float32 with R % tile_r == 0 (batch on lanes).
    Returns qddot in the same lane-major layout: (QDIM, R, 128).
    Callers that keep this layout end-to-end avoid any transpose HBM pass.
    """
    mconst, ccoef, w, taus = consts
    n = QDIM
    R = xk.shape[1]
    assert xk.shape == (3 * n, R, LANES) and R % tile_r == 0

    grid_spec = pltpu.PrefetchScalarGridSpec(
        num_scalar_prefetch=4,
        grid=(R // tile_r,),
        in_specs=[pl.BlockSpec((3 * n, tile_r, LANES), lambda i, *_: (0, i, 0))],
        out_specs=pl.BlockSpec((n, tile_r, LANES), lambda i, *_: (0, i, 0)),
    )
    return pl.pallas_call(
        acrobot_kernel,
        out_shape=jax.ShapeDtypeStruct((n, R, LANES), jnp.float32),
        grid_spec=grid_spec,
        compiler_params=pltpu.CompilerParams(
            dimension_semantics=("parallel",)),
    )(mconst, ccoef, w, taus, xk)


def multilink_acrobot_forward(q, v, u, consts, *, tile_r=256, min_grid_steps=8):
    """q, v, u: (B, QDIM) float32.  Returns qddot: (B, QDIM) float32."""
    B, n = q.shape
    assert n == QDIM

    # --- tile selection: ~0.25-1.5 MiB blocks, prefer >= min_grid_steps steps
    rows = -(-B // LANES)                                  # ceil(B / 128)
    rows = ((rows + CHUNK - 1) // CHUNK) * CHUNK           # multiple of 8
    tgt = max(CHUNK, (rows // min_grid_steps // CHUNK) * CHUNK)
    tile = max(CHUNK, min(tile_r, tgt, rows))
    tile = (tile // CHUNK) * CHUNK
    rows_p = ((rows + tile - 1) // tile) * tile
    Bp = rows_p * LANES

    # --- single stacked layout pass: (B, 3n) -> (3n, rows_p, 128)
    x = jnp.concatenate([q, v, u], axis=1)                 # (B, 3n)
    if Bp != B:                                            # zero pad: M stays SPD
        x = jnp.pad(x, ((0, Bp - B), (0, 0)))
    xk = x.T.reshape(3 * n, rows_p, LANES)                 # batch on lanes

    out = _acrobot_pallas(xk, consts, tile)
    return out.reshape(n, Bp).T[:B]


# ---------------------------------------------------------------------------
# Glue: parameter-derived constant tables (host-side, tiny)
# ---------------------------------------------------------------------------
def build_constants(ms, ls, g, Is, taus):
    n = ms.shape[0]
    Mconst = np.zeros((n, n), np.float32)
    Ccoef = np.zeros((n, n), np.float32)
    for i in range(n):
        for j in range(n):
            t = max(i, j)
            Mconst[i, j] += Is[t:].sum()                       # sum_{k>=max} Is[k]
            if i == j:
                Mconst[i, i] += ls[i] ** 2 * (0.25 * ms[i] + ms[i + 1:].sum())
            else:
                Ccoef[i, j] = ls[i] * ls[j] * (0.5 * ms[t] + ms[t + 1:].sum())
    # w_p = g * ls_p * (0.5 * ms_p + sum_{k>p} ms_k)
    suffix_excl = np.concatenate(
        [np.cumsum(ms[::-1])[::-1][1:], [0.0]]).astype(np.float32)
    w = (g * ls * (0.5 * ms + suffix_excl)).astype(np.float32)
    return (jnp.asarray(Mconst.reshape(-1), jnp.float32),
            jnp.asarray(Ccoef.reshape(-1), jnp.float32),
            jnp.asarray(w, jnp.float32),
            jnp.asarray(np.asarray(taus, np.float32).reshape(-1)))


# ---------------------------------------------------------------------------
# Pure-JAX reference mirroring the PyTorch module (autodiff for Cv and G)
# ---------------------------------------------------------------------------
def reference_forward(q, v, u, ms, ls, g, Is, taus):
    n = ms.shape[0]

    def mass_matrix_single(qs):
        M = jnp.zeros((n, n), jnp.float32)
        for k in range(n):
            for i in range(n):
                for j in range(n):
                    if i > k or j > k:
                        continue
                    if i == j:
                        Mij = ls[i] ** 2
                        if i == k:
                            Mij = Mij / 4.0
                    else:
                        s, t = min(i, j), max(i, j)
                        Mij = ls[i] * ls[j] * jnp.cos(jnp.sum(qs[s + 1:t + 1]))
                        if i == k or j == k:
                            Mij = Mij / 2.0
                    M = M.at[i, j].add(ms[k] * Mij + Is[k])
        return M

    def potential_single(qs):
        V_ = ls * jnp.cos(jnp.cumsum(qs))
        V_ = jnp.cumsum(V_) - V_ / 2.0
        return -jnp.sum(ms * g * V_)

    def qddot_single(qs, vs, us):
        M = mass_matrix_single(qs)
        dM = jax.jacfwd(mass_matrix_single)(qs)   # (n,n,n), last axis = d/dq
        Cv = (jnp.einsum('ijl,j,l->i', dM, vs, vs)
              - 0.5 * jnp.einsum('jli,j,l->i', dM, vs, vs))
        G = jax.grad(potential_single)(qs)
        F = taus * us
        return jnp.linalg.solve(M, F - Cv - G)

    return jax.vmap(qddot_single)(q, v, u)


# ---------------------------------------------------------------------------
if __name__ == "__main__":
    n = QDIM
    B = 2048            # small demo batch: 16 lane-dense rows, 2 grid steps
    key = jax.random.PRNGKey(0)
    kp, kq, kv, ku = jax.random.split(key, 4)

    # synthetic positive parameters (ms, ls, g, taus); small floor keeps the
    # mass matrix well-conditioned across the whole batch
    params = jnp.abs(jax.random.normal(kp, (3 * n + 1,), dtype=jnp.float32)) + 0.1
    ms = params[:n]
    ls = params[n:2 * n]
    g = params[2 * n]
    taus = params[2 * n + 1:3 * n + 1]
    Is = ms * ls ** 2 / 12.0

    consts = build_constants(np.asarray(ms), np.asarray(ls), float(g),
                             np.asarray(Is), np.asarray(taus))

    q = jax.random.normal(kq, (B, n), dtype=jnp.float32)
    v = jax.random.normal(kv, (B, n), dtype=jnp.float32)
    u = jax.random.normal(ku, (B, n), dtype=jnp.float32)

    qddot = multilink_acrobot_forward(q, v, u, consts)
    qddot = jax.block_until_ready(qddot)

    ref = reference_forward(q, v, u, ms, ls, g, Is, taus)
    np.testing.assert_allclose(np.asarray(qddot), np.asarray(ref),
                               rtol=5e-3, atol=5e-3)
    print("KERNEL_OK")
</pallas_src>

<mosaic_0001>
module attributes {stable_mosaic.version = 11 : i64} {
  func.func @acrobot_kernel(%arg0: i32, %arg1: memref<16xf32, #tpu.memory_space<smem>>, %arg2: memref<16xf32, #tpu.memory_space<smem>>, %arg3: memref<4xf32, #tpu.memory_space<smem>>, %arg4: memref<4xf32, #tpu.memory_space<smem>>, %arg5: memref<12x8x128xf32, #tpu.memory_space<vmem>>, %arg6: memref<4x8x128xf32, #tpu.memory_space<vmem>>) attributes {dimension_semantics = [#tpu.dimension_semantics<parallel>], iteration_bounds = array<i64: 2>, scalar_prefetch = 4 : i64, scratch_operands = 0 : i64, tpu.core_type = #tpu.core_type<tc>, window_params = [{transform_indices = @transform_0, window_bounds = array<i64: 12, 8, 128>}, {transform_indices = @transform_1, window_bounds = array<i64: 4, 8, 128>}]} {
    %c0 = arith.constant 0 : index
    %0 = memref.load %arg1[%c0] : memref<16xf32, #tpu.memory_space<smem>>
    %c1 = arith.constant 1 : index
    %1 = memref.load %arg1[%c1] : memref<16xf32, #tpu.memory_space<smem>>
    %c2 = arith.constant 2 : index
    %2 = memref.load %arg1[%c2] : memref<16xf32, #tpu.memory_space<smem>>
    %c3 = arith.constant 3 : index
    %3 = memref.load %arg1[%c3] : memref<16xf32, #tpu.memory_space<smem>>
    %c5 = arith.constant 5 : index
    %4 = memref.load %arg1[%c5] : memref<16xf32, #tpu.memory_space<smem>>
    %c6 = arith.constant 6 : index
    %5 = memref.load %arg1[%c6] : memref<16xf32, #tpu.memory_space<smem>>
    %c7 = arith.constant 7 : index
    %6 = memref.load %arg1[%c7] : memref<16xf32, #tpu.memory_space<smem>>
    %c10 = arith.constant 10 : index
    %7 = memref.load %arg1[%c10] : memref<16xf32, #tpu.memory_space<smem>>
    %c11 = arith.constant 11 : index
    %8 = memref.load %arg1[%c11] : memref<16xf32, #tpu.memory_space<smem>>
    %c15 = arith.constant 15 : index
    %9 = memref.load %arg1[%c15] : memref<16xf32, #tpu.memory_space<smem>>
    %c1_0 = arith.constant 1 : index
    %10 = memref.load %arg2[%c1_0] : memref<16xf32, #tpu.memory_space<smem>>
    %c2_1 = arith.constant 2 : index
    %11 = memref.load %arg2[%c2_1] : memref<16xf32, #tpu.memory_space<smem>>
    %c3_2 = arith.constant 3 : index
    %12 = memref.load %arg2[%c3_2] : memref<16xf32, #tpu.memory_space<smem>>
    %c6_3 = arith.constant 6 : index
    %13 = memref.load %arg2[%c6_3] : memref<16xf32, #tpu.memory_space<smem>>
    %c7_4 = arith.constant 7 : index
    %14 = memref.load %arg2[%c7_4] : memref<16xf32, #tpu.memory_space<smem>>
    %c11_5 = arith.constant 11 : index
    %15 = memref.load %arg2[%c11_5] : memref<16xf32, #tpu.memory_space<smem>>
    %c0_6 = arith.constant 0 : index
    %16 = memref.load %arg3[%c0_6] : memref<4xf32, #tpu.memory_space<smem>>
    %c1_7 = arith.constant 1 : index
    %17 = memref.load %arg3[%c1_7] : memref<4xf32, #tpu.memory_space<smem>>
    %c2_8 = arith.constant 2 : index
    %18 = memref.load %arg3[%c2_8] : memref<4xf32, #tpu.memory_space<smem>>
    %c3_9 = arith.constant 3 : index
    %19 = memref.load %arg3[%c3_9] : memref<4xf32, #tpu.memory_space<smem>>
    %c0_10 = arith.constant 0 : index
    %20 = memref.load %arg4[%c0_10] : memref<4xf32, #tpu.memory_space<smem>>
    %c1_11 = arith.constant 1 : index
    %21 = memref.load %arg4[%c1_11] : memref<4xf32, #tpu.memory_space<smem>>
    %c2_12 = arith.constant 2 : index
    %22 = memref.load %arg4[%c2_12] : memref<4xf32, #tpu.memory_space<smem>>
    %c3_13 = arith.constant 3 : index
    %23 = memref.load %arg4[%c3_13] : memref<4xf32, #tpu.memory_space<smem>>
    %24 = vector.broadcast %0 : f32 to vector<8x128xf32>
    %25 = vector.broadcast %4 : f32 to vector<8x128xf32>
    %26 = vector.broadcast %7 : f32 to vector<8x128xf32>
    %27 = vector.broadcast %9 : f32 to vector<8x128xf32>
    %c0_14 = arith.constant 0 : index
    %c0_15 = arith.constant 0 : index
    %c0_16 = arith.constant 0 : index
    %28 = vector.load %arg5[%c0_14, %c0_15, %c0_16] : memref<12x8x128xf32, #tpu.memory_space<vmem>>, vector<1x8x128xf32>
    %29 = vector.shape_cast %28 : vector<1x8x128xf32> to vector<8x128xf32>
    %c1_17 = arith.constant 1 : index
    %c0_18 = arith.constant 0 : index
    %c0_19 = arith.constant 0 : index
    %30 = vector.load %arg5[%c1_17, %c0_18, %c0_19] : memref<12x8x128xf32, #tpu.memory_space<vmem>>, vector<1x8x128xf32>
    %31 = vector.shape_cast %30 : vector<1x8x128xf32> to vector<8x128xf32>
    %c2_20 = arith.constant 2 : index
    %c0_21 = arith.constant 0 : index
    %c0_22 = arith.constant 0 : index
    %32 = vector.load %arg5[%c2_20, %c0_21, %c0_22] : memref<12x8x128xf32, #tpu.memory_space<vmem>>, vector<1x8x128xf32>
    %33 = vector.shape_cast %32 : vector<1x8x128xf32> to vector<8x128xf32>
    %c3_23 = arith.constant 3 : index
    %c0_24 = arith.constant 0 : index
    %c0_25 = arith.constant 0 : index
    %34 = vector.load %arg5[%c3_23, %c0_24, %c0_25] : memref<12x8x128xf32, #tpu.memory_space<vmem>>, vector<1x8x128xf32>
    %35 = vector.shape_cast %34 : vector<1x8x128xf32> to vector<8x128xf32>
    %c4 = arith.constant 4 : index
    %c0_26 = arith.constant 0 : index
    %c0_27 = arith.constant 0 : index
    %36 = vector.load %arg5[%c4, %c0_26, %c0_27] : memref<12x8x128xf32, #tpu.memory_space<vmem>>, vector<1x8x128xf32>
    %37 = vector.shape_cast %36 : vector<1x8x128xf32> to vector<8x128xf32>
    %c5_28 = arith.constant 5 : index
    %c0_29 = arith.constant 0 : index
    %c0_30 = arith.constant 0 : index
    %38 = vector.load %arg5[%c5_28, %c0_29, %c0_30] : memref<12x8x128xf32, #tpu.memory_space<vmem>>, vector<1x8x128xf32>
    %39 = vector.shape_cast %38 : vector<1x8x128xf32> to vector<8x128xf32>
    %c6_31 = arith.constant 6 : index
    %c0_32 = arith.constant 0 : index
    %c0_33 = arith.constant 0 : index
    %40 = vector.load %arg5[%c6_31, %c0_32, %c0_33] : memref<12x8x128xf32, #tpu.memory_space<vmem>>, vector<1x8x128xf32>
    %41 = vector.shape_cast %40 : vector<1x8x128xf32> to vector<8x128xf32>
    %c7_34 = arith.constant 7 : index
    %c0_35 = arith.constant 0 : index
    %c0_36 = arith.constant 0 : index
    %42 = vector.load %arg5[%c7_34, %c0_35, %c0_36] : memref<12x8x128xf32, #tpu.memory_space<vmem>>, vector<1x8x128xf32>
    %43 = vector.shape_cast %42 : vector<1x8x128xf32> to vector<8x128xf32>
    %c8 = arith.constant 8 : index
    %c0_37 = arith.constant 0 : index
    %c0_38 = arith.constant 0 : index
    %44 = vector.load %arg5[%c8, %c0_37, %c0_38] : memref<12x8x128xf32, #tpu.memory_space<vmem>>, vector<1x8x128xf32>
    %45 = vector.shape_cast %44 : vector<1x8x128xf32> to vector<8x128xf32>
    %c9 = arith.constant 9 : index
    %c0_39 = arith.constant 0 : index
    %c0_40 = arith.constant 0 : index
    %46 = vector.load %arg5[%c9, %c0_39, %c0_40] : memref<12x8x128xf32, #tpu.memory_space<vmem>>, vector<1x8x128xf32>
    %47 = vector.shape_cast %46 : vector<1x8x128xf32> to vector<8x128xf32>
    %c10_41 = arith.constant 10 : index
    %c0_42 = arith.constant 0 : index
    %c0_43 = arith.constant 0 : index
    %48 = vector.load %arg5[%c10_41, %c0_42, %c0_43] : memref<12x8x128xf32, #tpu.memory_space<vmem>>, vector<1x8x128xf32>
    %49 = vector.shape_cast %48 : vector<1x8x128xf32> to vector<8x128xf32>
    %c11_44 = arith.constant 11 : index
    %c0_45 = arith.constant 0 : index
    %c0_46 = arith.constant 0 : index
    %50 = vector.load %arg5[%c11_44, %c0_45, %c0_46] : memref<12x8x128xf32, #tpu.memory_space<vmem>>, vector<1x8x128xf32>
    %51 = vector.shape_cast %50 : vector<1x8x128xf32> to vector<8x128xf32>
    %52 = arith.addf %29, %31 : vector<8x128xf32>
    %53 = arith.addf %37, %39 : vector<8x128xf32>
    %54 = arith.addf %52, %33 : vector<8x128xf32>
    %55 = arith.addf %53, %41 : vector<8x128xf32>
    %56 = arith.addf %54, %35 : vector<8x128xf32>
    %57 = arith.addf %55, %43 : vector<8x128xf32>
    %58 = math.cos %29 : vector<8x128xf32>
    %59 = math.cos %52 : vector<8x128xf32>
    %60 = math.cos %54 : vector<8x128xf32>
    %61 = math.cos %56 : vector<8x128xf32>
    %62 = math.sin %29 : vector<8x128xf32>
    %63 = math.sin %52 : vector<8x128xf32>
    %64 = math.sin %54 : vector<8x128xf32>
    %65 = math.sin %56 : vector<8x128xf32>
    %66 = arith.mulf %59, %58 : vector<8x128xf32>
    %67 = arith.mulf %63, %62 : vector<8x128xf32>
    %68 = arith.addf %66, %67 : vector<8x128xf32>
    %69 = arith.mulf %63, %58 : vector<8x128xf32>
    %70 = arith.mulf %59, %62 : vector<8x128xf32>
    %71 = arith.subf %69, %70 : vector<8x128xf32>
    %72 = vector.broadcast %10 : f32 to vector<8x128xf32>
    %73 = arith.mulf %72, %68 : vector<8x128xf32>
    %74 = vector.broadcast %1 : f32 to vector<8x128xf32>
    %75 = arith.addf %74, %73 : vector<8x128xf32>
    %76 = vector.broadcast %10 : f32 to vector<8x128xf32>
    %77 = arith.mulf %76, %71 : vector<8x128xf32>
    %78 = arith.subf %53, %37 : vector<8x128xf32>
    %79 = arith.mulf %77, %37 : vector<8x128xf32>
    %80 = arith.mulf %79, %39 : vector<8x128xf32>
    %81 = arith.mulf %60, %58 : vector<8x128xf32>
    %82 = arith.mulf %64, %62 : vector<8x128xf32>
    %83 = arith.addf %81, %82 : vector<8x128xf32>
    %84 = arith.mulf %64, %58 : vector<8x128xf32>
    %85 = arith.mulf %60, %62 : vector<8x128xf32>
    %86 = arith.subf %84, %85 : vector<8x128xf32>
    %87 = vector.broadcast %11 : f32 to vector<8x128xf32>
    %88 = arith.mulf %87, %83 : vector<8x128xf32>
    %89 = vector.broadcast %2 : f32 to vector<8x128xf32>
    %90 = arith.addf %89, %88 : vector<8x128xf32>
    %91 = vector.broadcast %11 : f32 to vector<8x128xf32>
    %92 = arith.mulf %91, %86 : vector<8x128xf32>
    %93 = arith.subf %55, %37 : vector<8x128xf32>
    %94 = arith.mulf %92, %37 : vector<8x128xf32>
    %95 = arith.mulf %94, %41 : vector<8x128xf32>
    %96 = arith.mulf %61, %58 : vector<8x128xf32>
    %97 = arith.mulf %65, %62 : vector<8x128xf32>
    %98 = arith.addf %96, %97 : vector<8x128xf32>
    %99 = arith.mulf %65, %58 : vector<8x128xf32>
    %100 = arith.mulf %61, %62 : vector<8x128xf32>
    %101 = arith.subf %99, %100 : vector<8x128xf32>
    %102 = vector.broadcast %12 : f32 to vector<8x128xf32>
    %103 = arith.mulf %102, %98 : vector<8x128xf32>
    %104 = vector.broadcast %3 : f32 to vector<8x128xf32>
    %105 = arith.addf %104, %103 : vector<8x128xf32>
    %106 = vector.broadcast %12 : f32 to vector<8x128xf32>
    %107 = arith.mulf %106, %101 : vector<8x128xf32>
    %108 = arith.subf %57, %37 : vector<8x128xf32>
    %109 = arith.mulf %107, %37 : vector<8x128xf32>
    %110 = arith.mulf %109, %43 : vector<8x128xf32>
    %111 = arith.mulf %60, %59 : vector<8x128xf32>
    %112 = arith.mulf %64, %63 : vector<8x128xf32>
    %113 = arith.addf %111, %112 : vector<8x128xf32>
    %114 = arith.mulf %64, %59 : vector<8x128xf32>
    %115 = arith.mulf %60, %63 : vector<8x128xf32>
    %116 = arith.subf %114, %115 : vector<8x128xf32>
    %117 = vector.broadcast %13 : f32 to vector<8x128xf32>
    %118 = arith.mulf %117, %113 : vector<8x128xf32>
    %119 = vector.broadcast %5 : f32 to vector<8x128xf32>
    %120 = arith.addf %119, %118 : vector<8x128xf32>
    %121 = vector.broadcast %13 : f32 to vector<8x128xf32>
    %122 = arith.mulf %121, %116 : vector<8x128xf32>
    %123 = arith.subf %55, %53 : vector<8x128xf32>
    %124 = arith.mulf %122, %39 : vector<8x128xf32>
    %125 = arith.mulf %124, %41 : vector<8x128xf32>
    %126 = arith.mulf %61, %59 : vector<8x128xf32>
    %127 = arith.mulf %65, %63 : vector<8x128xf32>
    %128 = arith.addf %126, %127 : vector<8x128xf32>
    %129 = arith.mulf %65, %59 : vector<8x128xf32>
    %130 = arith.mulf %61, %63 : vector<8x128xf32>
    %131 = arith.subf %129, %130 : vector<8x128xf32>
    %132 = vector.broadcast %14 : f32 to vector<8x128xf32>
    %133 = arith.mulf %132, %128 : vector<8x128xf32>
    %134 = vector.broadcast %6 : f32 to vector<8x128xf32>
    %135 = arith.addf %134, %133 : vector<8x128xf32>
    %136 = vector.broadcast %14 : f32 to vector<8x128xf32>
    %137 = arith.mulf %136, %131 : vector<8x128xf32>
    %138 = arith.subf %57, %53 : vector<8x128xf32>
    %139 = arith.mulf %137, %39 : vector<8x128xf32>
    %140 = arith.mulf %139, %43 : vector<8x128xf32>
    %141 = arith.mulf %61, %60 : vector<8x128xf32>
    %142 = arith.mulf %65, %64 : vector<8x128xf32>
    %143 = arith.addf %141, %142 : vector<8x128xf32>
    %144 = arith.mulf %65, %60 : vector<8x128xf32>
    %145 = arith.mulf %61, %64 : vector<8x128xf32>
    %146 = arith.subf %144, %145 : vector<8x128xf32>
    %147 = vector.broadcast %15 : f32 to vector<8x128xf32>
    %148 = arith.mulf %147, %143 : vector<8x128xf32>
    %149 = vector.broadcast %8 : f32 to vector<8x128xf32>
    %150 = arith.addf %149, %148 : vector<8x128xf32>
    %151 = vector.broadcast %15 : f32 to vector<8x128xf32>
    %152 = arith.mulf %151, %146 : vector<8x128xf32>
    %153 = arith.subf %57, %55 : vector<8x128xf32>
    %154 = arith.mulf %152, %41 : vector<8x128xf32>
    %155 = arith.mulf %154, %43 : vector<8x128xf32>
    %156 = arith.mulf %77, %39 : vector<8x128xf32>
    %157 = arith.mulf %156, %78 : vector<8x128xf32>
    %158 = arith.mulf %92, %41 : vector<8x128xf32>
    %159 = arith.mulf %158, %93 : vector<8x128xf32>
    %160 = arith.addf %157, %159 : vector<8x128xf32>
    %161 = arith.mulf %107, %43 : vector<8x128xf32>
    %162 = arith.mulf %161, %108 : vector<8x128xf32>
    %163 = arith.addf %160, %162 : vector<8x128xf32>
    %cst = arith.constant 0.000000e+00 : f32
    %164 = vector.broadcast %cst : f32 to vector<8x128xf32>
    %165 = arith.subf %164, %163 : vector<8x128xf32>
    %166 = arith.mulf %77, %37 : vector<8x128xf32>
    %167 = arith.mulf %166, %78 : vector<8x128xf32>
    %168 = arith.mulf %122, %41 : vector<8x128xf32>
    %169 = arith.mulf %168, %123 : vector<8x128xf32>
    %170 = arith.addf %167, %169 : vector<8x128xf32>
    %171 = arith.mulf %137, %43 : vector<8x128xf32>
    %172 = arith.mulf %171, %138 : vector<8x128xf32>
    %173 = arith.addf %170, %172 : vector<8x128xf32>
    %cst_47 = arith.constant 0.000000e+00 : f32
    %174 = vector.broadcast %cst_47 : f32 to vector<8x128xf32>
    %175 = arith.subf %174, %173 : vector<8x128xf32>
    %176 = arith.addf %175, %80 : vector<8x128xf32>
    %177 = arith.addf %176, %95 : vector<8x128xf32>
    %178 = arith.addf %177, %110 : vector<8x128xf32>
    %179 = arith.mulf %92, %37 : vector<8x128xf32>
    %180 = arith.mulf %179, %93 : vector<8x128xf32>
    %181 = arith.mulf %122, %39 : vector<8x128xf32>
    %182 = arith.mulf %181, %123 : vector<8x128xf32>
    %183 = arith.addf %180, %182 : vector<8x128xf32>
    %184 = arith.mulf %152, %43 : vector<8x128xf32>
    %185 = arith.mulf %184, %153 : vector<8x128xf32>
    %186 = arith.addf %183, %185 : vector<8x128xf32>
    %cst_48 = arith.constant 0.000000e+00 : f32
    %187 = vector.broadcast %cst_48 : f32 to vector<8x128xf32>
    %188 = arith.subf %187, %186 : vector<8x128xf32>
    %189 = arith.addf %188, %95 : vector<8x128xf32>
    %190 = arith.addf %189, %110 : vector<8x128xf32>
    %191 = arith.addf %190, %125 : vector<8x128xf32>
    %192 = arith.addf %191, %140 : vector<8x128xf32>
    %193 = arith.mulf %107, %37 : vector<8x128xf32>
    %194 = arith.mulf %193, %108 : vector<8x128xf32>
    %195 = arith.mulf %137, %39 : vector<8x128xf32>
    %196 = arith.mulf %195, %138 : vector<8x128xf32>
    %197 = arith.addf %194, %196 : vector<8x128xf32>
    %198 = arith.mulf %152, %41 : vector<8x128xf32>
    %199 = arith.mulf %198, %153 : vector<8x128xf32>
    %200 = arith.addf %197, %199 : vector<8x128xf32>
    %cst_49 = arith.constant 0.000000e+00 : f32
    %201 = vector.broadcast %cst_49 : f32 to vector<8x128xf32>
    %202 = arith.subf %201, %200 : vector<8x128xf32>
    %203 = arith.addf %202, %110 : vector<8x128xf32>
    %204 = arith.addf %203, %140 : vector<8x128xf32>
    %205 = arith.addf %204, %155 : vector<8x128xf32>
    %206 = vector.broadcast %19 : f32 to vector<8x128xf32>
    %207 = arith.mulf %206, %65 : vector<8x128xf32>
    %208 = vector.broadcast %18 : f32 to vector<8x128xf32>
    %209 = arith.mulf %208, %64 : vector<8x128xf32>
    %210 = arith.addf %207, %209 : vector<8x128xf32>
    %211 = vector.broadcast %17 : f32 to vector<8x128xf32>
    %212 = arith.mulf %211, %63 : vector<8x128xf32>
    %213 = arith.addf %210, %212 : vector<8x128xf32>
    %214 = vector.broadcast %16 : f32 to vector<8x128xf32>
    %215 = arith.mulf %214, %62 : vector<8x128xf32>
    %216 = arith.addf %213, %215 : vector<8x128xf32>
    %217 = vector.broadcast %20 : f32 to vector<8x128xf32>
    %218 = arith.mulf %217, %45 : vector<8x128xf32>
    %219 = arith.subf %218, %165 : vector<8x128xf32>
    %220 = arith.subf %219, %216 : vector<8x128xf32>
    %221 = vector.broadcast %21 : f32 to vector<8x128xf32>
    %222 = arith.mulf %221, %47 : vector<8x128xf32>
    %223 = arith.subf %222, %178 : vector<8x128xf32>
    %224 = arith.subf %223, %213 : vector<8x128xf32>
    %225 = vector.broadcast %22 : f32 to vector<8x128xf32>
    %226 = arith.mulf %225, %49 : vector<8x128xf32>
    %227 = arith.subf %226, %192 : vector<8x128xf32>
    %228 = arith.subf %227, %210 : vector<8x128xf32>
    %229 = vector.broadcast %23 : f32 to vector<8x128xf32>
    %230 = arith.mulf %229, %51 : vector<8x128xf32>
    %231 = arith.subf %230, %205 : vector<8x128xf32>
    %232 = arith.subf %231, %207 : vector<8x128xf32>
    %233 = tpu.reciprocal %24 {approx = true} : vector<8x128xf32> -> vector<8x128xf32>
    %234 = arith.mulf %24, %233 : vector<8x128xf32>
    %cst_50 = arith.constant 2.000000e+00 : f32
    %235 = vector.broadcast %cst_50 : f32 to vector<8x128xf32>
    %236 = arith.subf %235, %234 : vector<8x128xf32>
    %237 = arith.mulf %233, %236 : vector<8x128xf32>
    %238 = arith.mulf %75, %237 : vector<8x128xf32>
    %239 = arith.mulf %90, %237 : vector<8x128xf32>
    %240 = arith.mulf %105, %237 : vector<8x128xf32>
    %241 = arith.mulf %238, %75 : vector<8x128xf32>
    %242 = arith.subf %25, %241 : vector<8x128xf32>
    %243 = tpu.reciprocal %242 {approx = true} : vector<8x128xf32> -> vector<8x128xf32>
    %244 = arith.mulf %242, %243 : vector<8x128xf32>
    %cst_51 = arith.constant 2.000000e+00 : f32
    %245 = vector.broadcast %cst_51 : f32 to vector<8x128xf32>
    %246 = arith.subf %245, %244 : vector<8x128xf32>
    %247 = arith.mulf %243, %246 : vector<8x128xf32>
    %248 = arith.mulf %239, %75 : vector<8x128xf32>
    %249 = arith.subf %120, %248 : vector<8x128xf32>
    %250 = arith.mulf %249, %247 : vector<8x128xf32>
    %251 = arith.mulf %240, %75 : vector<8x128xf32>
    %252 = arith.subf %135, %251 : vector<8x128xf32>
    %253 = arith.mulf %252, %247 : vector<8x128xf32>
    %254 = arith.mulf %239, %90 : vector<8x128xf32>
    %255 = arith.subf %26, %254 : vector<8x128xf32>
    %256 = arith.mulf %250, %249 : vector<8x128xf32>
    %257 = arith.subf %255, %256 : vector<8x128xf32>
    %258 = tpu.reciprocal %257 {approx = true} : vector<8x128xf32> -> vector<8x128xf32>
    %259 = arith.mulf %257, %258 : vector<8x128xf32>
    %cst_52 = arith.constant 2.000000e+00 : f32
    %260 = vector.broadcast %cst_52 : f32 to vector<8x128xf32>
    %261 = arith.subf %260, %259 : vector<8x128xf32>
    %262 = arith.mulf %258, %261 : vector<8x128xf32>
    %263 = arith.mulf %240, %90 : vector<8x128xf32>
    %264 = arith.subf %150, %263 : vector<8x128xf32>
    %265 = arith.mulf %253, %249 : vector<8x128xf32>
    %266 = arith.subf %264, %265 : vector<8x128xf32>
    %267 = arith.mulf %266, %262 : vector<8x128xf32>
    %268 = arith.mulf %240, %105 : vector<8x128xf32>
    %269 = arith.subf %27, %268 : vector<8x128xf32>
    %270 = arith.mulf %253, %252 : vector<8x128xf32>
    %271 = arith.subf %269, %270 : vector<8x128xf32>
    %272 = arith.mulf %267, %266 : vector<8x128xf32>
    %273 = arith.subf %271, %272 : vector<8x128xf32>
    %274 = tpu.reciprocal %273 {approx = true} : vector<8x128xf32> -> vector<8x128xf32>
    %275 = arith.mulf %273, %274 : vector<8x128xf32>
    %cst_53 = arith.constant 2.000000e+00 : f32
    %276 = vector.broadcast %cst_53 : f32 to vector<8x128xf32>
    %277 = arith.subf %276, %275 : vector<8x128xf32>
    %278 = arith.mulf %274, %277 : vector<8x128xf32>
    %279 = arith.mulf %238, %220 : vector<8x128xf32>
    %280 = arith.subf %224, %279 : vector<8x128xf32>
    %281 = arith.mulf %239, %220 : vector<8x128xf32>
    %282 = arith.subf %228, %281 : vector<8x128xf32>
    %283 = arith.mulf %250, %280 : vector<8x128xf32>
    %284 = arith.subf %282, %283 : vector<8x128xf32>
    %285 = arith.mulf %240, %220 : vector<8x128xf32>
    %286 = arith.subf %232, %285 : vector<8x128xf32>
    %287 = arith.mulf %253, %280 : vector<8x128xf32>
    %288 = arith.subf %286, %287 : vector<8x128xf32>
    %289 = arith.mulf %267, %284 : vector<8x128xf32>
    %290 = arith.subf %288, %289 : vector<8x128xf32>
    %291 = arith.mulf %290, %278 : vector<8x128xf32>
    %292 = arith.mulf %284, %262 : vector<8x128xf32>
    %293 = arith.mulf %267, %291 : vector<8x128xf32>
    %294 = arith.subf %292, %293 : vector<8x128xf32>
    %295 = arith.mulf %280, %247 : vector<8x128xf32>
    %296 = arith.mulf %250, %294 : vector<8x128xf32>
    %297 = arith.subf %295, %296 : vector<8x128xf32>
    %298 = arith.mulf %253, %291 : vector<8x128xf32>
    %299 = arith.subf %297, %298 : vector<8x128xf32>
    %300 = arith.mulf %220, %237 : vector<8x128xf32>
    %301 = arith.mulf %238, %299 : vector<8x128xf32>
    %302 = arith.subf %300, %301 : vector<8x128xf32>
    %303 = arith.mulf %239, %294 : vector<8x128xf32>
    %304 = arith.subf %302, %303 : vector<8x128xf32>
    %305 = arith.mulf %240, %291 : vector<8x128xf32>
    %306 = arith.subf %304, %305 : vector<8x128xf32>
    %c0_54 = arith.constant 0 : index
    %c0_55 = arith.constant 0 : index
    %c0_56 = arith.constant 0 : index
    %307 = vector.load %arg6[%c0_54, %c0_55, %c0_56] : memref<4x8x128xf32, #tpu.memory_space<vmem>>, vector<1x8x128xf32>
    %308 = vector.shape_cast %307 : vector<1x8x128xf32> to vector<8x128xf32>
    %309 = vector.shape_cast %306 : vector<8x128xf32> to vector<1x8x128xf32>
    tpu.vector_store %arg6[%c0_54, %c0_55, %c0_56], %309 {strides = array<i32>} : memref<4x8x128xf32, #tpu.memory_space<vmem>>, vector<1x8x128xf32>,
    %c1_57 = arith.constant 1 : index
    %c0_58 = arith.constant 0 : index
    %c0_59 = arith.constant 0 : index
    %310 = vector.load %arg6[%c1_57, %c0_58, %c0_59] : memref<4x8x128xf32, #tpu.memory_space<vmem>>, vector<1x8x128xf32>
    %311 = vector.shape_cast %310 : vector<1x8x128xf32> to vector<8x128xf32>
    %312 = vector.shape_cast %299 : vector<8x128xf32> to vector<1x8x128xf32>
    tpu.vector_store %arg6[%c1_57, %c0_58, %c0_59], %312 {strides = array<i32>} : memref<4x8x128xf32, #tpu.memory_space<vmem>>, vector<1x8x128xf32>,
    %c2_60 = arith.constant 2 : index
    %c0_61 = arith.constant 0 : index
    %c0_62 = arith.constant 0 : index
    %313 = vector.load %arg6[%c2_60, %c0_61, %c0_62] : memref<4x8x128xf32, #tpu.memory_space<vmem>>, vector<1x8x128xf32>
    %314 = vector.shape_cast %313 : vector<1x8x128xf32> to vector<8x128xf32>
    %315 = vector.shape_cast %294 : vector<8x128xf32> to vector<1x8x128xf32>
    tpu.vector_store %arg6[%c2_60, %c0_61, %c0_62], %315 {strides = array<i32>} : memref<4x8x128xf32, #tpu.memory_space<vmem>>, vector<1x8x128xf32>,
    %c3_63 = arith.constant 3 : index
    %c0_64 = arith.constant 0 : index
    %c0_65 = arith.constant 0 : index
    %316 = vector.load %arg6[%c3_63, %c0_64, %c0_65] : memref<4x8x128xf32, #tpu.memory_space<vmem>>, vector<1x8x128xf32>
    %317 = vector.shape_cast %316 : vector<1x8x128xf32> to vector<8x128xf32>
    %318 = vector.shape_cast %291 : vector<8x128xf32> to vector<1x8x128xf32>
    tpu.vector_store %arg6[%c3_63, %c0_64, %c0_65], %318 {strides = array<i32>} : memref<4x8x128xf32, #tpu.memory_space<vmem>>, vector<1x8x128xf32>,
    return
  }
  func.func @transform_0(%arg0: i32, %arg1: memref<16xf32, #tpu.memory_space<smem>>, %arg2: memref<16xf32, #tpu.memory_space<smem>>, %arg3: memref<4xf32, #tpu.memory_space<smem>>, %arg4: memref<4xf32, #tpu.memory_space<smem>>) -> (i32, i32, i32) {
    %c0_i32 = arith.constant 0 : i32
    %c0_i32_0 = arith.constant 0 : i32
    %c0_i32_1 = arith.constant 0 : i32
    return %c0_i32, %arg0, %c0_i32_0 : i32, i32, i32
  }
  func.func @transform_1(%arg0: i32, %arg1: memref<16xf32, #tpu.memory_space<smem>>, %arg2: memref<16xf32, #tpu.memory_space<smem>>, %arg3: memref<4xf32, #tpu.memory_space<smem>>, %arg4: memref<4xf32, #tpu.memory_space<smem>>) -> (i32, i32, i32) {
    %c0_i32 = arith.constant 0 : i32
    %c0_i32_0 = arith.constant 0 : i32
    %c0_i32_1 = arith.constant 0 : i32
    return %c0_i32, %arg0, %c0_i32_0 : i32, i32, i32
  }
}

</mosaic_0001>

<llo_original>
// kernel: tpu_custom_call.1
$region0: #{tpu_custom_call.1}
  #allocation0 [shape = 'u32[]', space=smem, size = 0x4, offset = 0x4, fixed_abs, tag = 'smem constant byte address 0x4 - core index']
  #allocation1 [shape = 'u32[144,128]{1,0:T(1,128)}', space=vmem, size = 0x12000, scoped, tag = 'internal scratch']
  #allocation2 [shape = 's32[1]{0}', space=sflag, size = 0x4, scoped, tag = 'scoped memory for tpu_custom_call.1']
  #allocation3 [shape = 'u8[512]{0}', space=smem, size = 0x200, scoped, tag = 'prefetched SMEM operand 0']
  #allocation4 [shape = 'u8[512]{0}', space=smem, size = 0x200, scoped, tag = 'prefetched SMEM operand 1']
  #allocation5 [shape = 'u8[512]{0}', space=smem, size = 0x200, scoped, tag = 'prefetched SMEM operand 2']
  #allocation6 [shape = 'u8[512]{0}', space=smem, size = 0x200, scoped, tag = 'prefetched SMEM operand 3']
  %s0 = inlined_call_operand.hbm [shape: f32[16], index: 0, kind: input, shape index: {}]
  %s1 = inlined_call_operand.vmem [shape: f32[16], index: 1, kind: input, shape index: {}]
  %s2 = inlined_call_operand.vmem [shape: f32[4], index: 2, kind: input, shape index: {}]
  %s3 = inlined_call_operand.vmem [shape: f32[4], index: 3, kind: input, shape index: {}]
  %s4 = inlined_call_operand.hbm [shape: f32[12,16,128], index: 4, kind: input, shape index: {}]
  %s5 = inlined_call_operand.hbm [shape: f32[4,16,128], index: 5, kind: output, shape index: {}]
  %s6 = sld [smem:[#allocation0]]
  $region41: #{tpu_custom_call.1} parent=0
    _
  %s8 = ssub.s32 1, %s6
  %s9 = scalar_select 0, %s8, %s6
  %11 = dma.hbm_to_smem %s0, 16, [#allocation3], [#allocation2]
  %s12 = sshll.u32 %s1, 4
  %s13 = int_to_ptr.vmem [resolvable:$true] %s12
  %15 = dma.vmem_to_smem %s13, 16, [#allocation4], [#allocation2]
  %s16 = sshll.u32 %s2, 4
  %s17 = int_to_ptr.vmem [resolvable:$true] %s16
  %19 = dma.vmem_to_smem %s17, 16, [#allocation5], [#allocation2]
  %s20 = sshll.u32 %s3, 4
  %s21 = int_to_ptr.vmem [resolvable:$true] %s20
  %23 = dma.vmem_to_smem %s21, 16, [#allocation6], [#allocation2]
  %24 = dma.done [#allocation2], 64
  %25 = sfence
  $region1: #{tpu_custom_call.1} parent=0
    #allocation7 [shape = 'u8[98304]{0}', space=vmem, size = 0x18000, scoped, tag = 'input window, operand 4']
    #allocation8 [shape = 's32[2]{0}', space=sflag, size = 0x8, scoped, tag = 'scoped memory for tpu_custom_call.1']
    #allocation9 [shape = 's32[2]{0}', space=sflag, size = 0x8, scoped, tag = 'scoped memory for tpu_custom_call.1']
    #allocation10 [shape = 'u8[32768]{0}', space=vmem, size = 0x8000, scoped, tag = 'output window, operand 0']
    %26 = vsyncpa [#allocation8], 0
    %s27 = scalar_lea.sflag [#allocation8], 1
    %28 = vsyncpa %s27, 0
    %29 = vsyncpa [#allocation9], 0
    %s30 = scalar_lea.sflag [#allocation9], 1
    %31 = vsyncpa %s30, 0
    loop: start=0, step=1, limit=4
    $region2: #{tpu_custom_call.1} parent=1 // loop_pre_header
      _
    $region3: #{tpu_custom_call.1} parent=1 // loop_header
      %s33 = sphi 0, %s37
      %p34 = scmp.ge.s32.totalorder %s33, 4
      %s43 = sphi 0, %s45
      %s46 = sphi 0, %s43
      %s47 = sphi 0, %s46
      %s63 = sphi 0, %s47
      %s69 = sphi 0, %s71
      %s72 = sphi 0, %s69
      %s73 = sphi 0, %s72
      %s89 = sphi 0, %s73
    $region4: #{tpu_custom_call.1} parent=1 // loop_header_branch
      %36 = sbr.rel (%p34) target = $region8
    $region5: #{tpu_custom_call.1} parent=1 // loop_body
      %s38 = ssub.s32 %s33, 1
      %s39 = ssub.s32 %s33, 2
      %s40 = sadd.s32 %s33, 1
      %s41 = ssub.s32 %s33, %s40
      %p42 = scmp.eq.s32.totalorder %s41, 0
      %s44 = sadd.s32 %s43, 1
      %s45 = scalar_select %p42, %s43, %s44
      %p48 = pneg %p42
      %p49 = scmp.eq.s32.totalorder %s33, 1
      %p50 = por %p48, %p49
      %p51 = scmp.ne.s32.totalorder %s43, %s46
      %p52 = scmp.eq.s32.totalorder %s33, 0
      %p53 = por %p51, %p52
      %p54 = scmp.ne.s32.totalorder %s43, %s46
      %p55 = scmp.eq.s32.totalorder %s38, 1
      %p56 = por %p54, %p55
      %p57 = scmp.ne.s32.totalorder %s46, %s47
      %p58 = scmp.eq.s32.totalorder %s38, 0
      %p59 = por %p57, %p58
      %p60 = scmp.ne.s32.totalorder %s46, %s47
      %p61 = scmp.eq.s32.totalorder %s39, 1
      %p62 = por %p60, %p61
      %p64 = scmp.ne.s32.totalorder %s47, %s63
      %p65 = scmp.eq.s32.totalorder %s39, 0
      %p66 = por %p64, %p65
      %s67 = ssub.s32 %s33, %s40
      %p68 = scmp.eq.s32.totalorder %s67, 0
      %s70 = sadd.s32 %s69, 1
      %s71 = scalar_select %p68, %s69, %s70
      %p74 = pneg %p68
      %p75 = scmp.eq.s32.totalorder %s33, 1
      %p76 = por %p74, %p75
      %p77 = scmp.ne.s32.totalorder %s69, %s72
      %p78 = scmp.eq.s32.totalorder %s33, 0
      %p79 = por %p77, %p78
      %p80 = scmp.ne.s32.totalorder %s69, %s72
      %p81 = scmp.eq.s32.totalorder %s38, 1
      %p82 = por %p80, %p81
      %p83 = scmp.ne.s32.totalorder %s72, %s73
      %p84 = scmp.eq.s32.totalorder %s38, 0
      %p85 = por %p83, %p84
      %p86 = scmp.ne.s32.totalorder %s72, %s73
      %p87 = scmp.eq.s32.totalorder %s39, 1
      %p88 = por %p86, %p87
      %p90 = scmp.ne.s32.totalorder %s73, %s89
      %p91 = scmp.eq.s32.totalorder %s39, 0
      %p92 = por %p90, %p91
      %p93 = scmp.le.s32.totalorder 1, %s33
      %p94 = scmp.lt.s32.totalorder %s33, 3
      %p95 = pnand %p93, %p94
      %p96 = pneg %p95
      // Predicated region
      $region9: #{tpu_custom_call.1} parent=5 // pred_check
        _
      $region10: #{tpu_custom_call.1} parent=5 // pred_check_branch
        %98 = sbr.rel (%p95) target = $region12
      $region11: #{tpu_custom_call.1} parent=5 // pred_region
        %s99 = ssub.s32 %s33, 1
      $region12: #{tpu_custom_call.1} parent=5 // pred_fallthru
        _
      %p100 = scmp.lt.s32.totalorder %s33, 2
      // Predicated region
      $region13: #{tpu_custom_call.1} parent=5 // pred_check
        %p101 = pneg %p100
      $region14: #{tpu_custom_call.1} parent=5 // pred_check_branch
        %103 = sbr.rel (%p101) target = $region16
      $region15: #{tpu_custom_call.1} parent=5 // pred_region
        // Predicated region
        $region17: #{tpu_custom_call.1} parent=15 // pred_check
          %p104 = pneg %p53
        $region18: #{tpu_custom_call.1} parent=15 // pred_check_branch
          %106 = sbr.rel (%p104) target = $region20
        $region19: #{tpu_custom_call.1} parent=15 // pred_region
          %s107 = sand.u32 %s43, 1
          %s108 = scalar_lea.sflag [#allocation8], %s107
          %s109 = sand.u32 %s43, 1
          %s110 = smul.addr %s109, 96
          %s111 = scalar_lea.vmem [#allocation7], %s110
          %s113 = ssub.s32 1536, 1536
          %114 = vsyncadd %s108, %s113
          %s115 = smul.addr %s33, 128
          %s116 = scalar_lea.hbm %s4, %s115
          %s117 = sshll.u32 %s111, 4
          %s118 = int_to_ptr.vmem [resolvable:$true] %s117
          %123 = dma.hbm_to_vmem [thread:$0]  %s116, 1536, %s118, %s108, 256, 128, 8
        $region20: #{tpu_custom_call.1} parent=15 // pred_fallthru
          _
      $region16: #{tpu_custom_call.1} parent=5 // pred_fallthru
        _
      %p124 = scmp.le.s32.totalorder 1, %s33
      %p125 = scmp.lt.s32.totalorder %s33, 3
      %p126 = pnand %p124, %p125
      %p127 = pneg %p126
      // Predicated region
      $region21: #{tpu_custom_call.1} parent=5 // pred_check
        _
      $region22: #{tpu_custom_call.1} parent=5 // pred_check_branch
        %129 = sbr.rel (%p126) target = $region24
      $region23: #{tpu_custom_call.1} parent=5 // pred_region
        %s130 = ssub.s32 %s33, 1
        %s131 = sand.u32 %s46, 1
        %s132 = scalar_lea.sflag [#allocation8], %s131
        %s133 = sand.u32 %s46, 1
        %s134 = smul.addr %s133, 96
        %s135 = scalar_lea.vmem [#allocation7], %s134
        // Predicated region
        $region25: #{tpu_custom_call.1} parent=23 // pred_check
          %p136 = pneg %p59
        $region26: #{tpu_custom_call.1} parent=23 // pred_check_branch
          %138 = sbr.rel (%p136) target = $region28
        $region27: #{tpu_custom_call.1} parent=23 // pred_region
          %139 = dma.done %s132, 1536
        $region28: #{tpu_custom_call.1} parent=23 // pred_fallthru
          _
        %s140 = sand.u32 %s46, 1
        %s141 = scalar_lea.sflag [#allocation8], %s140
        %s142 = sand.u32 %s46, 1
        %s143 = smul.addr %s142, 96
        %s144 = scalar_lea.vmem [#allocation7], %s143
        %p145 = pneg %p59
        %p146 = pneg %p56
        %p147 = pneg %p85
        %p148 = pneg %p82
        %s149 = sand.u32 %s72, 1
        %s150 = scalar_lea.sflag [#allocation9], %s149
        %s151 = sand.u32 %s72, 1
        %s152 = smul.addr %s151, 32
        %s153 = scalar_lea.vmem [#allocation10], %s152
        %s154 = sld [smem:[#allocation3]]
        %s155 = sld [smem:[#allocation3 + $0x1]]
        %s156 = sld [smem:[#allocation3 + $0x2]]
        %s157 = sld [smem:[#allocation3 + $0x3]]
        %s158 = sld [smem:[#allocation3 + $0x5]]
        %s159 = sld [smem:[#allocation3 + $0x6]]
        %s160 = sld [smem:[#allocation3 + $0x7]]
        %s161 = sld [smem:[#allocation3 + $0xa]]
        %s162 = sld [smem:[#allocation3 + $0xb]]
        %s163 = sld [smem:[#allocation3 + $0xf]]
        %s164 = sld [smem:[#allocation4 + $0x1]]
        %s165 = sld [smem:[#allocation4 + $0x2]]
        %s166 = sld [smem:[#allocation4 + $0x3]]
        %s167 = sld [smem:[#allocation4 + $0x6]]
        %s168 = sld [smem:[#allocation4 + $0x7]]
        %s169 = sld [smem:[#allocation4 + $0xb]]
        %s170 = sld [smem:[#allocation5]]
        %s171 = sld [smem:[#allocation5 + $0x1]]
        %s172 = sld [smem:[#allocation5 + $0x2]]
        %s173 = sld [smem:[#allocation5 + $0x3]]
        %s174 = sld [smem:[#allocation6]]
        %s175 = sld [smem:[#allocation6 + $0x1]]
        %s176 = sld [smem:[#allocation6 + $0x2]]
        %s177 = sld [smem:[#allocation6 + $0x3]]
        %v178 = vstv %s154
        %v179 = vstv %s158
        %v180 = vstv %s161
        %v181 = vstv %s163
        %v182 = vld [vmem:[%s135] sm:$0xff]
        %s183 = scalar_lea.vmem %s135, 8 [#allocation7]
        %v184 = vld [vmem:[%s183] sm:$0xff]
        %s185 = scalar_lea.vmem %s135, 16 [#allocation7]
        %v186 = vld [vmem:[%s185] sm:$0xff]
        %s187 = scalar_lea.vmem %s135, 24 [#allocation7]
        %v188 = vld [vmem:[%s187] sm:$0xff]
        %s189 = scalar_lea.vmem %s135, 32 [#allocation7]
        %v190 = vld [vmem:[%s189] sm:$0xff]
        %s191 = scalar_lea.vmem %s135, 40 [#allocation7]
        %v192 = vld [vmem:[%s191] sm:$0xff]
        %s193 = scalar_lea.vmem %s135, 48 [#allocation7]
        %v194 = vld [vmem:[%s193] sm:$0xff]
        %s195 = scalar_lea.vmem %s135, 56 [#allocation7]
        %v196 = vld [vmem:[%s195] sm:$0xff]
        %s197 = scalar_lea.vmem %s135, 64 [#allocation7]
        %v198 = vld [vmem:[%s197] sm:$0xff]
        %s199 = scalar_lea.vmem %s135, 72 [#allocation7]
        %v200 = vld [vmem:[%s199] sm:$0xff]
        %s201 = scalar_lea.vmem %s135, 80 [#allocation7]
        %v202 = vld [vmem:[%s201] sm:$0xff]
        %s203 = scalar_lea.vmem %s135, 88 [#allocation7]
        %v204 = vld [vmem:[%s203] sm:$0xff]
        %v205 = vadd.f32 %v182, %v184
        %v206 = vadd.f32 %v190, %v192
        %v207 = vadd.f32 %v205, %v186
        %v208 = vadd.f32 %v206, %v194
        %v209 = vadd.f32 %v207, %v188
        %v210 = vadd.f32 %v208, %v196
        %v211 = vand.u32 2147483647, %v182
        %vm212 = vcmp.le.f32.partialorder %v211, 0.7853982
        %vm213 = vcmp.lt.s32.totalorder %v182, 0
        %v214 = vand.u32 %v182, 2139095040
        %v215 = vshrl.u32 %v214, 23
        %v216 = vsub.s32 %v215, 127
        %v217 = vand.u32 2147483647, %v182
        %v218 = vand.u32 %v217, 8388607
        %v219 = vor.u32 %v218, 8388608
        %v220 = vsub.s32 0, %v219
        %v221 = vadd.s32 %v216, 1
        %vm222 = vcmp.gt.s32.totalorder %v221, 0
        %v223 = vsel %vm222, %v221, 0
        %v224 = vshrl.u32 %v223, 5
        %v225 = vand.u32 %v223, 31
        %v226 = vsub.s32 32, %v225
        %v227 = vshrl.u32 683565275, %v226
        %v228 = vshll.u32 683565275, %v225
        %v229 = vshrl.u32 2475754826, %v226
        %v230 = vor.u32 %v228, %v229
        %v231 = vshll.u32 2475754826, %v225
        %v232 = vshrl.u32 2131351028, %v226
        %v233 = vor.u32 %v231, %v232
        %v234 = vshll.u32 2131351028, %v225
        %v235 = vshrl.u32 2102212464, %v226
        %v236 = vor.u32 %v234, %v235
        %v237 = vshll.u32 2102212464, %v225
        %v238 = vshrl.u32 920167782, %v226
        %v239 = vor.u32 %v237, %v238
        %v240 = vshll.u32 920167782, %v225
        %v241 = vshrl.u32 1326507024, %v226
        %v242 = vor.u32 %v240, %v241
        %vm243 = vcmp.lt.s32.totalorder %v224, 1
        %vm244 = vcmp.lt.s32.totalorder %v224, 2
        %vm245 = vcmp.lt.s32.totalorder %v224, 3
        %vm246 = vcmp.lt.s32.totalorder %v224, 4
        %v247 = vsel %vm243, %v227, %v230
        %v248 = vsel %vm246, %v236, 2102212464
        %v249 = vsel %vm245, %v233, %v248
        %v250 = vsel %vm244, %v247, %v249
        %v251 = vsel %vm243, %v230, %v233
        %v252 = vsel %vm246, %v239, 920167782
        %v253 = vsel %vm245, %v236, %v252
        %v254 = vsel %vm244, %v251, %v253
        %v255 = vsel %vm243, %v233, %v236
        %v256 = vsel %vm246, %v242, 1326507024
        %v257 = vsel %vm245, %v239, %v256
        %v258 = vsel %vm244, %v255, %v257
        %v259 = vshll.u32 %v219, 8
        %v260 = vmul.u32.u64.compose %v259, %v258
        %v261 = vextract.low.u32 %v260
        %v262 = vextract.high.u32 %v260
        %v263 = vmul.u32.u64.compose %v259, %v254
        %v264 = vextract.low.u32 %v263
        %v265 = vextract.high.u32 %v263
        %v266 = vmul.u32 %v259, %v250
        %v267 = vadd.s32 %v262, %v264
        %vm268 = vc.u32 %v262, %v264
        %v269 = vadd.s32 %v265, 1
        %v270 = vsel %vm268, %v269, %v265
        %v271 = vadd.s32 %v266, %v270
        %v272 = vadd.s32 %v271, 536870912
        %v273 = vshrl.u32 %v272, 30
        %v274 = vshll.u32 %v273, 30
        %v275 = vsub.s32 %v271, %v274
        %vm276 = vcmp.lt.s32.totalorder %v275, 0
        %v277 = vsub.s32 0, %v275
        %v278 = vsel %vm276, %v277, %v275
        %v279 = vclz %v278
        %v280 = vsub.s32 %v279, 2
        %vm281 = vcmp.gt.s32.totalorder 0, %v280
        %v282 = vsel %vm281, 0, %v280
        %v283 = vsub.s32 32, %v282
        %v284 = vshll.u32 %v275, %v282
        %v285 = vshrl.u32 %v267, %v283
        %v286 = vor.u32 %v284, %v285
        %v287 = vsub.s32 4294967266, %v282
        %v288 = vadd.s32 %v287, 127
        %v289 = vshll.u32 %v288, 23
        %v290 = vor.u32 4788187, %v289
        %v291 = vand.u32 2147483647, %v290
        %v293 = vcvt.s32.f32 %v286
        %v294 = vmul.f32 %v293, %v291
        %v295 = vxor.u32 %v294, 2147483648
        %v296 = vsel %vm213, %v295, %v294
        %v297 = vsub.s32 4, %v273
        %v298 = vsel %vm213, %v297, %v273
        %v299 = vsel %vm212, %v182, %v296
        %v300 = vsel %vm212, 0, %v298
        %v301 = vcosq.f32.pop %v299
        %v302 = vsinq.f32.pop %v299
        %vm303 = vweird.f32 %v182
        %v304 = vand.u32 %v300, 3
        %vm305 = vcmp.lt.s32.totalorder %v304, 2
        %vm306 = vcmp.eq.s32.totalorder %v304, 0
        %v307 = vxor.u32 %v302, 2147483648
        %v308 = vsel %vm306, %v301, %v307
        %vm309 = vcmp.eq.s32.totalorder %v304, 2
        %v310 = vxor.u32 %v301, 2147483648
        %v311 = vsel %vm309, %v310, %v302
        %v312 = vsel %vm305, %v308, %v311
        %v313 = vsel %vm303, nan, %v312
        %v314 = vand.u32 2147483647, %v205
        %vm315 = vcmp.le.f32.partialorder %v314, 0.7853982
        %vm316 = vcmp.lt.s32.totalorder %v205, 0
        %v317 = vand.u32 %v205, 2139095040
        %v318 = vshrl.u32 %v317, 23
        %v319 = vsub.s32 %v318, 127
        %v320 = vand.u32 2147483647, %v205
        %v321 = vand.u32 %v320, 8388607
        %v322 = vor.u32 %v321, 8388608
        %v323 = vsub.s32 0, %v322
        %v324 = vadd.s32 %v319, 1
        %vm325 = vcmp.gt.s32.totalorder %v324, 0
        %v326 = vsel %vm325, %v324, 0
        %v327 = vshrl.u32 %v326, 5
        %v328 = vand.u32 %v326, 31
        %v329 = vsub.s32 32, %v328
        %v330 = vshrl.u32 683565275, %v329
        %v331 = vshll.u32 683565275, %v328
        %v332 = vshrl.u32 2475754826, %v329
        %v333 = vor.u32 %v331, %v332
        %v334 = vshll.u32 2475754826, %v328
        %v335 = vshrl.u32 2131351028, %v329
        %v336 = vor.u32 %v334, %v335
        %v337 = vshll.u32 2131351028, %v328
        %v338 = vshrl.u32 2102212464, %v329
        %v339 = vor.u32 %v337, %v338
        %v340 = vshll.u32 2102212464, %v328
        %v341 = vshrl.u32 920167782, %v329
        %v342 = vor.u32 %v340, %v341
        %v343 = vshll.u32 920167782, %v328
        %v344 = vshrl.u32 1326507024, %v329
        %v345 = vor.u32 %v343, %v344
        %vm346 = vcmp.lt.s32.totalorder %v327, 1
        %vm347 = vcmp.lt.s32.totalorder %v327, 2
        %vm348 = vcmp.lt.s32.totalorder %v327, 3
        %vm349 = vcmp.lt.s32.totalorder %v327, 4
        %v350 = vsel %vm346, %v330, %v333
        %v351 = vsel %vm349, %v339, 2102212464
        %v352 = vsel %vm348, %v336, %v351
        %v353 = vsel %vm347, %v350, %v352
        %v354 = vsel %vm346, %v333, %v336
        %v355 = vsel %vm349, %v342, 920167782
        %v356 = vsel %vm348, %v339, %v355
        %v357 = vsel %vm347, %v354, %v356
        %v358 = vsel %vm346, %v336, %v339
        %v359 = vsel %vm349, %v345, 1326507024
        %v360 = vsel %vm348, %v342, %v359
        %v361 = vsel %vm347, %v358, %v360
        %v362 = vshll.u32 %v322, 8
        %v363 = vmul.u32.u64.compose %v362, %v361
        %v364 = vextract.low.u32 %v363
        %v365 = vextract.high.u32 %v363
        %v366 = vmul.u32.u64.compose %v362, %v357
        %v367 = vextract.low.u32 %v366
        %v368 = vextract.high.u32 %v366
        %v369 = vmul.u32 %v362, %v353
        %v370 = vadd.s32 %v365, %v367
        %vm371 = vc.u32 %v365, %v367
        %v372 = vadd.s32 %v368, 1
        %v373 = vsel %vm371, %v372, %v368
        %v374 = vadd.s32 %v369, %v373
        %v375 = vadd.s32 %v374, 536870912
        %v376 = vshrl.u32 %v375, 30
        %v377 = vshll.u32 %v376, 30
        %v378 = vsub.s32 %v374, %v377
        %vm379 = vcmp.lt.s32.totalorder %v378, 0
        %v380 = vsub.s32 0, %v378
        %v381 = vsel %vm379, %v380, %v378
        %v382 = vclz %v381
        %v383 = vsub.s32 %v382, 2
        %vm384 = vcmp.gt.s32.totalorder 0, %v383
        %v385 = vsel %vm384, 0, %v383
        %v386 = vsub.s32 32, %v385
        %v387 = vshll.u32 %v378, %v385
        %v388 = vshrl.u32 %v370, %v386
        %v389 = vor.u32 %v387, %v388
        %v390 = vsub.s32 4294967266, %v385
        %v391 = vadd.s32 %v390, 127
        %v392 = vshll.u32 %v391, 23
        %v393 = vor.u32 4788187, %v392
        %v394 = vand.u32 2147483647, %v393
        %v396 = vcvt.s32.f32 %v389
        %v397 = vmul.f32 %v396, %v394
        %v398 = vxor.u32 %v397, 2147483648
        %v399 = vsel %vm316, %v398, %v397
        %v400 = vsub.s32 4, %v376
        %v401 = vsel %vm316, %v400, %v376
        %v402 = vsel %vm315, %v205, %v399
        %v403 = vsel %vm315, 0, %v401
        %v404 = vcosq.f32.pop %v402
        %v405 = vsinq.f32.pop %v402
        %vm406 = vweird.f32 %v205
        %v407 = vand.u32 %v403, 3
        %vm408 = vcmp.lt.s32.totalorder %v407, 2
        %vm409 = vcmp.eq.s32.totalorder %v407, 0
        %v410 = vxor.u32 %v405, 2147483648
        %v411 = vsel %vm409, %v404, %v410
        %vm412 = vcmp.eq.s32.totalorder %v407, 2
        %v413 = vxor.u32 %v404, 2147483648
        %v414 = vsel %vm412, %v413, %v405
        %v415 = vsel %vm408, %v411, %v414
        %v416 = vsel %vm406, nan, %v415
        %v417 = vand.u32 2147483647, %v207
        %vm418 = vcmp.le.f32.partialorder %v417, 0.7853982
        %vm419 = vcmp.lt.s32.totalorder %v207, 0
        %v420 = vand.u32 %v207, 2139095040
        %v421 = vshrl.u32 %v420, 23
        %v422 = vsub.s32 %v421, 127
        %v423 = vand.u32 2147483647, %v207
        %v424 = vand.u32 %v423, 8388607
        %v425 = vor.u32 %v424, 8388608
        %v426 = vsub.s32 0, %v425
        %v427 = vadd.s32 %v422, 1
        %vm428 = vcmp.gt.s32.totalorder %v427, 0
        %v429 = vsel %vm428, %v427, 0
        %v430 = vshrl.u32 %v429, 5
        %v431 = vand.u32 %v429, 31
        %v432 = vsub.s32 32, %v431
        %v433 = vshrl.u32 683565275, %v432
        %v434 = vshll.u32 683565275, %v431
        %v435 = vshrl.u32 2475754826, %v432
        %v436 = vor.u32 %v434, %v435
        %v437 = vshll.u32 2475754826, %v431
        %v438 = vshrl.u32 2131351028, %v432
        %v439 = vor.u32 %v437, %v438
        %v440 = vshll.u32 2131351028, %v431
        %v441 = vshrl.u32 2102212464, %v432
        %v442 = vor.u32 %v440, %v441
        %v443 = vshll.u32 2102212464, %v431
        %v444 = vshrl.u32 920167782, %v432
        %v445 = vor.u32 %v443, %v444
        %v446 = vshll.u32 920167782, %v431
        %v447 = vshrl.u32 1326507024, %v432
        %v448 = vor.u32 %v446, %v447
        %vm449 = vcmp.lt.s32.totalorder %v430, 1
        %vm450 = vcmp.lt.s32.totalorder %v430, 2
        %vm451 = vcmp.lt.s32.totalorder %v430, 3
        %vm452 = vcmp.lt.s32.totalorder %v430, 4
        %v453 = vsel %vm449, %v433, %v436
        %v454 = vsel %vm452, %v442, 2102212464
        %v455 = vsel %vm451, %v439, %v454
        %v456 = vsel %vm450, %v453, %v455
        %v457 = vsel %vm449, %v436, %v439
        %v458 = vsel %vm452, %v445, 920167782
        %v459 = vsel %vm451, %v442, %v458
        %v460 = vsel %vm450, %v457, %v459
        %v461 = vsel %vm449, %v439, %v442
        %v462 = vsel %vm452, %v448, 1326507024
        %v463 = vsel %vm451, %v445, %v462
        %v464 = vsel %vm450, %v461, %v463
        %v465 = vshll.u32 %v425, 8
        %v466 = vmul.u32.u64.compose %v465, %v464
        %v467 = vextract.low.u32 %v466
        %v468 = vextract.high.u32 %v466
        %v469 = vmul.u32.u64.compose %v465, %v460
        %v470 = vextract.low.u32 %v469
        %v471 = vextract.high.u32 %v469
        %v472 = vmul.u32 %v465, %v456
        %v473 = vadd.s32 %v468, %v470
        %vm474 = vc.u32 %v468, %v470
        %v475 = vadd.s32 %v471, 1
        %v476 = vsel %vm474, %v475, %v471
        %v477 = vadd.s32 %v472, %v476
        %v478 = vadd.s32 %v477, 536870912
        %v479 = vshrl.u32 %v478, 30
        %v480 = vshll.u32 %v479, 30
        %v481 = vsub.s32 %v477, %v480
        %vm482 = vcmp.lt.s32.totalorder %v481, 0
        %v483 = vsub.s32 0, %v481
        %v484 = vsel %vm482, %v483, %v481
        %v485 = vclz %v484
        %v486 = vsub.s32 %v485, 2
        %vm487 = vcmp.gt.s32.totalorder 0, %v486
        %v488 = vsel %vm487, 0, %v486
        %v489 = vsub.s32 32, %v488
        %v490 = vshll.u32 %v481, %v488
        %v491 = vshrl.u32 %v473, %v489
        %v492 = vor.u32 %v490, %v491
        %v493 = vsub.s32 4294967266, %v488
        %v494 = vadd.s32 %v493, 127
        %v495 = vshll.u32 %v494, 23
        %v496 = vor.u32 4788187, %v495
        %v497 = vand.u32 2147483647, %v496
        %v499 = vcvt.s32.f32 %v492
        %v500 = vmul.f32 %v499, %v497
        %v501 = vxor.u32 %v500, 2147483648
        %v502 = vsel %vm419, %v501, %v500
        %v503 = vsub.s32 4, %v479
        %v504 = vsel %vm419, %v503, %v479
        %v505 = vsel %vm418, %v207, %v502
        %v506 = vsel %vm418, 0, %v504
        %v507 = vcosq.f32.pop %v505
        %v508 = vsinq.f32.pop %v505
        %vm509 = vweird.f32 %v207
        %v510 = vand.u32 %v506, 3
        %vm511 = vcmp.lt.s32.totalorder %v510, 2
        %vm512 = vcmp.eq.s32.totalorder %v510, 0
        %v513 = vxor.u32 %v508, 2147483648
        %v514 = vsel %vm512, %v507, %v513
        %vm515 = vcmp.eq.s32.totalorder %v510, 2
        %v516 = vxor.u32 %v507, 2147483648
        %v517 = vsel %vm515, %v516, %v508
        %v518 = vsel %vm511, %v514, %v517
        %v519 = vsel %vm509, nan, %v518
        %v520 = vand.u32 2147483647, %v209
        %vm521 = vcmp.le.f32.partialorder %v520, 0.7853982
        %vm522 = vcmp.lt.s32.totalorder %v209, 0
        %v523 = vand.u32 %v209, 2139095040
        %v524 = vshrl.u32 %v523, 23
        %v525 = vsub.s32 %v524, 127
        %v526 = vand.u32 2147483647, %v209
        %v527 = vand.u32 %v526, 8388607
        %v528 = vor.u32 %v527, 8388608
        %v529 = vsub.s32 0, %v528
        %v530 = vadd.s32 %v525, 1
        %vm531 = vcmp.gt.s32.totalorder %v530, 0
        %v532 = vsel %vm531, %v530, 0
        %v533 = vshrl.u32 %v532, 5
        %v534 = vand.u32 %v532, 31
        %v535 = vsub.s32 32, %v534
        %v536 = vshrl.u32 683565275, %v535
        %v537 = vshll.u32 683565275, %v534
        %v538 = vshrl.u32 2475754826, %v535
        %v539 = vor.u32 %v537, %v538
        %v540 = vshll.u32 2475754826, %v534
        %v541 = vshrl.u32 2131351028, %v535
        %v542 = vor.u32 %v540, %v541
        %v543 = vshll.u32 2131351028, %v534
        %v544 = vshrl.u32 2102212464, %v535
        %v545 = vor.u32 %v543, %v544
        %v546 = vshll.u32 2102212464, %v534
        %v547 = vshrl.u32 920167782, %v535
        %v548 = vor.u32 %v546, %v547
        %v549 = vshll.u32 920167782, %v534
        %v550 = vshrl.u32 1326507024, %v535
        %v551 = vor.u32 %v549, %v550
        %vm552 = vcmp.lt.s32.totalorder %v533, 1
        %vm553 = vcmp.lt.s32.totalorder %v533, 2
        %vm554 = vcmp.lt.s32.totalorder %v533, 3
        %vm555 = vcmp.lt.s32.totalorder %v533, 4
        %v556 = vsel %vm552, %v536, %v539
        %v557 = vsel %vm555, %v545, 2102212464
        %v558 = vsel %vm554, %v542, %v557
        %v559 = vsel %vm553, %v556, %v558
        %v560 = vsel %vm552, %v539, %v542
        %v561 = vsel %vm555, %v548, 920167782
        %v562 = vsel %vm554, %v545, %v561
        %v563 = vsel %vm553, %v560, %v562
        %v564 = vsel %vm552, %v542, %v545
        %v565 = vsel %vm555, %v551, 1326507024
        %v566 = vsel %vm554, %v548, %v565
        %v567 = vsel %vm553, %v564, %v566
        %v568 = vshll.u32 %v528, 8
        %v569 = vmul.u32.u64.compose %v568, %v567
        %v570 = vextract.low.u32 %v569
        %v571 = vextract.high.u32 %v569
        %v572 = vmul.u32.u64.compose %v568, %v563
        %v573 = vextract.low.u32 %v572
        %v574 = vextract.high.u32 %v572
        %v575 = vmul.u32 %v568, %v559
        %v576 = vadd.s32 %v571, %v573
        %vm577 = vc.u32 %v571, %v573
        %v578 = vadd.s32 %v574, 1
        %v579 = vsel %vm577, %v578, %v574
        %v580 = vadd.s32 %v575, %v579
        %v581 = vadd.s32 %v580, 536870912
        %v582 = vshrl.u32 %v581, 30
        %v583 = vshll.u32 %v582, 30
        %v584 = vsub.s32 %v580, %v583
        %vm585 = vcmp.lt.s32.totalorder %v584, 0
        %v586 = vsub.s32 0, %v584
        %v587 = vsel %vm585, %v586, %v584
        %v588 = vclz %v587
        %v589 = vsub.s32 %v588, 2
        %vm590 = vcmp.gt.s32.totalorder 0, %v589
        %v591 = vsel %vm590, 0, %v589
        %v592 = vsub.s32 32, %v591
        %v593 = vshll.u32 %v584, %v591
        %v594 = vshrl.u32 %v576, %v592
        %v595 = vor.u32 %v593, %v594
        %v596 = vsub.s32 4294967266, %v591
        %v597 = vadd.s32 %v596, 127
        %v598 = vshll.u32 %v597, 23
        %v599 = vor.u32 4788187, %v598
        %v600 = vand.u32 2147483647, %v599
        %v602 = vcvt.s32.f32 %v595
        %v603 = vmul.f32 %v602, %v600
        %v604 = vxor.u32 %v603, 2147483648
        %v605 = vsel %vm522, %v604, %v603
        %v606 = vsub.s32 4, %v582
        %v607 = vsel %vm522, %v606, %v582
        %v608 = vsel %vm521, %v209, %v605
        %v609 = vsel %vm521, 0, %v607
        %v610 = vcosq.f32.pop %v608
        %v611 = vsinq.f32.pop %v608
        %vm612 = vweird.f32 %v209
        %v613 = vand.u32 %v609, 3
        %vm614 = vcmp.lt.s32.totalorder %v613, 2
        %vm615 = vcmp.eq.s32.totalorder %v613, 0
        %v616 = vxor.u32 %v611, 2147483648
        %v617 = vsel %vm615, %v610, %v616
        %vm618 = vcmp.eq.s32.totalorder %v613, 2
        %v619 = vxor.u32 %v610, 2147483648
        %v620 = vsel %vm618, %v619, %v611
        %v621 = vsel %vm614, %v617, %v620
        %v622 = vsel %vm612, nan, %v621
        %v623 = vand.u32 2147483647, %v182
        %vm624 = vcmp.le.f32.partialorder %v623, 0.7853982
        %vm625 = vcmp.lt.s32.totalorder %v182, 0
        %v626 = vand.u32 %v182, 2139095040
        %v627 = vshrl.u32 %v626, 23
        %v628 = vsub.s32 %v627, 127
        %v629 = vand.u32 2147483647, %v182
        %v630 = vand.u32 %v629, 8388607
        %v631 = vor.u32 %v630, 8388608
        %v632 = vsub.s32 0, %v631
        %v633 = vadd.s32 %v628, 1
        %vm634 = vcmp.gt.s32.totalorder %v633, 0
        %v635 = vsel %vm634, %v633, 0
        %v636 = vshrl.u32 %v635, 5
        %v637 = vand.u32 %v635, 31
        %v638 = vsub.s32 32, %v637
        %v639 = vshrl.u32 683565275, %v638
        %v640 = vshll.u32 683565275, %v637
        %v641 = vshrl.u32 2475754826, %v638
        %v642 = vor.u32 %v640, %v641
        %v643 = vshll.u32 2475754826, %v637
        %v644 = vshrl.u32 2131351028, %v638
        %v645 = vor.u32 %v643, %v644
        %v646 = vshll.u32 2131351028, %v637
        %v647 = vshrl.u32 2102212464, %v638
        %v648 = vor.u32 %v646, %v647
        %v649 = vshll.u32 2102212464, %v637
        %v650 = vshrl.u32 920167782, %v638
        %v651 = vor.u32 %v649, %v650
        %v652 = vshll.u32 920167782, %v637
        %v653 = vshrl.u32 1326507024, %v638
        %v654 = vor.u32 %v652, %v653
        %vm655 = vcmp.lt.s32.totalorder %v636, 1
        %vm656 = vcmp.lt.s32.totalorder %v636, 2
        %vm657 = vcmp.lt.s32.totalorder %v636, 3
        %vm658 = vcmp.lt.s32.totalorder %v636, 4
        %v659 = vsel %vm655, %v639, %v642
        %v660 = vsel %vm658, %v648, 2102212464
        %v661 = vsel %vm657, %v645, %v660
        %v662 = vsel %vm656, %v659, %v661
        %v663 = vsel %vm655, %v642, %v645
        %v664 = vsel %vm658, %v651, 920167782
        %v665 = vsel %vm657, %v648, %v664
        %v666 = vsel %vm656, %v663, %v665
        %v667 = vsel %vm655, %v645, %v648
        %v668 = vsel %vm658, %v654, 1326507024
        %v669 = vsel %vm657, %v651, %v668
        %v670 = vsel %vm656, %v667, %v669
        %v671 = vshll.u32 %v631, 8
        %v672 = vmul.u32.u64.compose %v671, %v670
        %v673 = vextract.low.u32 %v672
        %v674 = vextract.high.u32 %v672
        %v675 = vmul.u32.u64.compose %v671, %v666
        %v676 = vextract.low.u32 %v675
        %v677 = vextract.high.u32 %v675
        %v678 = vmul.u32 %v671, %v662
        %v679 = vadd.s32 %v674, %v676
        %vm680 = vc.u32 %v674, %v676
        %v681 = vadd.s32 %v677, 1
        %v682 = vsel %vm680, %v681, %v677
        %v683 = vadd.s32 %v678, %v682
        %v684 = vadd.s32 %v683, 536870912
        %v685 = vshrl.u32 %v684, 30
        %v686 = vshll.u32 %v685, 30
        %v687 = vsub.s32 %v683, %v686
        %vm688 = vcmp.lt.s32.totalorder %v687, 0
        %v689 = vsub.s32 0, %v687
        %v690 = vsel %vm688, %v689, %v687
        %v691 = vclz %v690
        %v692 = vsub.s32 %v691, 2
        %vm693 = vcmp.gt.s32.totalorder 0, %v692
        %v694 = vsel %vm693, 0, %v692
        %v695 = vsub.s32 32, %v694
        %v696 = vshll.u32 %v687, %v694
        %v697 = vshrl.u32 %v679, %v695
        %v698 = vor.u32 %v696, %v697
        %v699 = vsub.s32 4294967266, %v694
        %v700 = vadd.s32 %v699, 127
        %v701 = vshll.u32 %v700, 23
        %v702 = vor.u32 4788187, %v701
        %v703 = vand.u32 2147483647, %v702
        %v705 = vcvt.s32.f32 %v698
        %v706 = vmul.f32 %v705, %v703
        %v707 = vxor.u32 %v706, 2147483648
        %v708 = vsel %vm625, %v707, %v706
        %v709 = vsub.s32 4, %v685
        %v710 = vsel %vm625, %v709, %v685
        %v711 = vsel %vm624, %v182, %v708
        %v712 = vsel %vm624, 0, %v710
        %v713 = vcosq.f32.pop %v711
        %v714 = vsinq.f32.pop %v711
        %vm715 = vweird.f32 %v182
        %v716 = vadd.s32 %v712, 3
        %v717 = vand.u32 %v716, 3
        %vm718 = vcmp.lt.s32.totalorder %v717, 2
        %vm719 = vcmp.eq.s32.totalorder %v717, 0
        %v720 = vxor.u32 %v714, 2147483648
        %v721 = vsel %vm719, %v713, %v720
        %vm722 = vcmp.eq.s32.totalorder %v717, 2
        %v723 = vxor.u32 %v713, 2147483648
        %v724 = vsel %vm722, %v723, %v714
        %v725 = vsel %vm718, %v721, %v724
        %v726 = vsel %vm715, nan, %v725
        %v727 = vand.u32 2147483647, %v205
        %vm728 = vcmp.le.f32.partialorder %v727, 0.7853982
        %vm729 = vcmp.lt.s32.totalorder %v205, 0
        %v730 = vand.u32 %v205, 2139095040
        %v731 = vshrl.u32 %v730, 23
        %v732 = vsub.s32 %v731, 127
        %v733 = vand.u32 2147483647, %v205
        %v734 = vand.u32 %v733, 8388607
        %v735 = vor.u32 %v734, 8388608
        %v736 = vsub.s32 0, %v735
        %v737 = vadd.s32 %v732, 1
        %vm738 = vcmp.gt.s32.totalorder %v737, 0
        %v739 = vsel %vm738, %v737, 0
        %v740 = vshrl.u32 %v739, 5
        %v741 = vand.u32 %v739, 31
        %v742 = vsub.s32 32, %v741
        %v743 = vshrl.u32 683565275, %v742
        %v744 = vshll.u32 683565275, %v741
        %v745 = vshrl.u32 2475754826, %v742
        %v746 = vor.u32 %v744, %v745
        %v747 = vshll.u32 2475754826, %v741
        %v748 = vshrl.u32 2131351028, %v742
        %v749 = vor.u32 %v747, %v748
        %v750 = vshll.u32 2131351028, %v741
        %v751 = vshrl.u32 2102212464, %v742
        %v752 = vor.u32 %v750, %v751
        %v753 = vshll.u32 2102212464, %v741
        %v754 = vshrl.u32 920167782, %v742
        %v755 = vor.u32 %v753, %v754
        %v756 = vshll.u32 920167782, %v741
        %v757 = vshrl.u32 1326507024, %v742
        %v758 = vor.u32 %v756, %v757
        %vm759 = vcmp.lt.s32.totalorder %v740, 1
        %vm760 = vcmp.lt.s32.totalorder %v740, 2
        %vm761 = vcmp.lt.s32.totalorder %v740, 3
        %vm762 = vcmp.lt.s32.totalorder %v740, 4
        %v763 = vsel %vm759, %v743, %v746
        %v764 = vsel %vm762, %v752, 2102212464
        %v765 = vsel %vm761, %v749, %v764
        %v766 = vsel %vm760, %v763, %v765
        %v767 = vsel %vm759, %v746, %v749
        %v768 = vsel %vm762, %v755, 920167782
        %v769 = vsel %vm761, %v752, %v768
        %v770 = vsel %vm760, %v767, %v769
        %v771 = vsel %vm759, %v749, %v752
        %v772 = vsel %vm762, %v758, 1326507024
        %v773 = vsel %vm761, %v755, %v772
        %v774 = vsel %vm760, %v771, %v773
        %v775 = vshll.u32 %v735, 8
        %v776 = vmul.u32.u64.compose %v775, %v774
        %v777 = vextract.low.u32 %v776
        %v778 = vextract.high.u32 %v776
        %v779 = vmul.u32.u64.compose %v775, %v770
        %v780 = vextract.low.u32 %v779
        %v781 = vextract.high.u32 %v779
        %v782 = vmul.u32 %v775, %v766
        %v783 = vadd.s32 %v778, %v780
        %vm784 = vc.u32 %v778, %v780
        %v785 = vadd.s32 %v781, 1
        %v786 = vsel %vm784, %v785, %v781
        %v787 = vadd.s32 %v782, %v786
        %v788 = vadd.s32 %v787, 536870912
        %v789 = vshrl.u32 %v788, 30
        %v790 = vshll.u32 %v789, 30
        %v791 = vsub.s32 %v787, %v790
        %vm792 = vcmp.lt.s32.totalorder %v791, 0
        %v793 = vsub.s32 0, %v791
        %v794 = vsel %vm792, %v793, %v791
        %v795 = vclz %v794
        %v796 = vsub.s32 %v795, 2
        %vm797 = vcmp.gt.s32.totalorder 0, %v796
        %v798 = vsel %vm797, 0, %v796
        %v799 = vsub.s32 32, %v798
        %v800 = vshll.u32 %v791, %v798
        %v801 = vshrl.u32 %v783, %v799
        %v802 = vor.u32 %v800, %v801
        %v803 = vsub.s32 4294967266, %v798
        %v804 = vadd.s32 %v803, 127
        %v805 = vshll.u32 %v804, 23
        %v806 = vor.u32 4788187, %v805
        %v807 = vand.u32 2147483647, %v806
        %v809 = vcvt.s32.f32 %v802
        %v810 = vmul.f32 %v809, %v807
        %v811 = vxor.u32 %v810, 2147483648
        %v812 = vsel %vm729, %v811, %v810
        %v813 = vsub.s32 4, %v789
        %v814 = vsel %vm729, %v813, %v789
        %v815 = vsel %vm728, %v205, %v812
        %v816 = vsel %vm728, 0, %v814
        %v817 = vcosq.f32.pop %v815
        %v818 = vsinq.f32.pop %v815
        %vm819 = vweird.f32 %v205
        %v820 = vadd.s32 %v816, 3
        %v821 = vand.u32 %v820, 3
        %vm822 = vcmp.lt.s32.totalorder %v821, 2
        %vm823 = vcmp.eq.s32.totalorder %v821, 0
        %v824 = vxor.u32 %v818, 2147483648
        %v825 = vsel %vm823, %v817, %v824
        %vm826 = vcmp.eq.s32.totalorder %v821, 2
        %v827 = vxor.u32 %v817, 2147483648
        %v828 = vsel %vm826, %v827, %v818
        %v829 = vsel %vm822, %v825, %v828
        %v830 = vsel %vm819, nan, %v829
        %v831 = vand.u32 2147483647, %v207
        %vm832 = vcmp.le.f32.partialorder %v831, 0.7853982
        %vm833 = vcmp.lt.s32.totalorder %v207, 0
        %v834 = vand.u32 %v207, 2139095040
        %v835 = vshrl.u32 %v834, 23
        %v836 = vsub.s32 %v835, 127
        %v837 = vand.u32 2147483647, %v207
        %v838 = vand.u32 %v837, 8388607
        %v839 = vor.u32 %v838, 8388608
        %v840 = vsub.s32 0, %v839
        %v841 = vadd.s32 %v836, 1
        %vm842 = vcmp.gt.s32.totalorder %v841, 0
        %v843 = vsel %vm842, %v841, 0
        %v844 = vshrl.u32 %v843, 5
        %v845 = vand.u32 %v843, 31
        %v846 = vsub.s32 32, %v845
        %v847 = vshrl.u32 683565275, %v846
        %v848 = vshll.u32 683565275, %v845
        %v849 = vshrl.u32 2475754826, %v846
        %v850 = vor.u32 %v848, %v849
        %v851 = vshll.u32 2475754826, %v845
        %v852 = vshrl.u32 2131351028, %v846
        %v853 = vor.u32 %v851, %v852
        %v854 = vshll.u32 2131351028, %v845
        %v855 = vshrl.u32 2102212464, %v846
        %v856 = vor.u32 %v854, %v855
        %v857 = vshll.u32 2102212464, %v845
        %v858 = vshrl.u32 920167782, %v846
        %v859 = vor.u32 %v857, %v858
        %v860 = vshll.u32 920167782, %v845
        %v861 = vshrl.u32 1326507024, %v846
        %v862 = vor.u32 %v860, %v861
        %vm863 = vcmp.lt.s32.totalorder %v844, 1
        %vm864 = vcmp.lt.s32.totalorder %v844, 2
        %vm865 = vcmp.lt.s32.totalorder %v844, 3
        %vm866 = vcmp.lt.s32.totalorder %v844, 4
        %v867 = vsel %vm863, %v847, %v850
        %v868 = vsel %vm866, %v856, 2102212464
        %v869 = vsel %vm865, %v853, %v868
        %v870 = vsel %vm864, %v867, %v869
        %v871 = vsel %vm863, %v850, %v853
        %v872 = vsel %vm866, %v859, 920167782
        %v873 = vsel %vm865, %v856, %v872
        %v874 = vsel %vm864, %v871, %v873
        %v875 = vsel %vm863, %v853, %v856
        %v876 = vsel %vm866, %v862, 1326507024
        %v877 = vsel %vm865, %v859, %v876
        %v878 = vsel %vm864, %v875, %v877
        %v879 = vshll.u32 %v839, 8
        %v880 = vmul.u32.u64.compose %v879, %v878
        %v881 = vextract.low.u32 %v880
        %v882 = vextract.high.u32 %v880
        %v883 = vmul.u32.u64.compose %v879, %v874
        %v884 = vextract.low.u32 %v883
        %v885 = vextract.high.u32 %v883
        %v886 = vmul.u32 %v879, %v870
        %v887 = vadd.s32 %v882, %v884
        %vm888 = vc.u32 %v882, %v884
        %v889 = vadd.s32 %v885, 1
        %v890 = vsel %vm888, %v889, %v885
        %v891 = vadd.s32 %v886, %v890
        %v892 = vadd.s32 %v891, 536870912
        %v893 = vshrl.u32 %v892, 30
        %v894 = vshll.u32 %v893, 30
        %v895 = vsub.s32 %v891, %v894
        %vm896 = vcmp.lt.s32.totalorder %v895, 0
        %v897 = vsub.s32 0, %v895
        %v898 = vsel %vm896, %v897, %v895
        %v899 = vclz %v898
        %v900 = vsub.s32 %v899, 2
        %vm901 = vcmp.gt.s32.totalorder 0, %v900
        %v902 = vsel %vm901, 0, %v900
        %v903 = vsub.s32 32, %v902
        %v904 = vshll.u32 %v895, %v902
        %v905 = vshrl.u32 %v887, %v903
        %v906 = vor.u32 %v904, %v905
        %v907 = vsub.s32 4294967266, %v902
        %v908 = vadd.s32 %v907, 127
        %v909 = vshll.u32 %v908, 23
        %v910 = vor.u32 4788187, %v909
        %v911 = vand.u32 2147483647, %v910
        %v913 = vcvt.s32.f32 %v906
        %v914 = vmul.f32 %v913, %v911
        %v915 = vxor.u32 %v914, 2147483648
        %v916 = vsel %vm833, %v915, %v914
        %v917 = vsub.s32 4, %v893
        %v918 = vsel %vm833, %v917, %v893
        %v919 = vsel %vm832, %v207, %v916
        %v920 = vsel %vm832, 0, %v918
        %v921 = vcosq.f32.pop %v919
        %v922 = vsinq.f32.pop %v919
        %vm923 = vweird.f32 %v207
        %v924 = vadd.s32 %v920, 3
        %v925 = vand.u32 %v924, 3
        %vm926 = vcmp.lt.s32.totalorder %v925, 2
        %vm927 = vcmp.eq.s32.totalorder %v925, 0
        %v928 = vxor.u32 %v922, 2147483648
        %v929 = vsel %vm927, %v921, %v928
        %vm930 = vcmp.eq.s32.totalorder %v925, 2
        %v931 = vxor.u32 %v921, 2147483648
        %v932 = vsel %vm930, %v931, %v922
        %v933 = vsel %vm926, %v929, %v932
        %v934 = vsel %vm923, nan, %v933
        %v935 = vand.u32 2147483647, %v209
        %vm936 = vcmp.le.f32.partialorder %v935, 0.7853982
        %vm937 = vcmp.lt.s32.totalorder %v209, 0
        %v938 = vand.u32 %v209, 2139095040
        %v939 = vshrl.u32 %v938, 23
        %v940 = vsub.s32 %v939, 127
        %v941 = vand.u32 2147483647, %v209
        %v942 = vand.u32 %v941, 8388607
        %v943 = vor.u32 %v942, 8388608
        %v944 = vsub.s32 0, %v943
        %v945 = vadd.s32 %v940, 1
        %vm946 = vcmp.gt.s32.totalorder %v945, 0
        %v947 = vsel %vm946, %v945, 0
        %v948 = vshrl.u32 %v947, 5
        %v949 = vand.u32 %v947, 31
        %v950 = vsub.s32 32, %v949
        %v951 = vshrl.u32 683565275, %v950
        %v952 = vshll.u32 683565275, %v949
        %v953 = vshrl.u32 2475754826, %v950
        %v954 = vor.u32 %v952, %v953
        %v955 = vshll.u32 2475754826, %v949
        %v956 = vshrl.u32 2131351028, %v950
        %v957 = vor.u32 %v955, %v956
        %v958 = vshll.u32 2131351028, %v949
        %v959 = vshrl.u32 2102212464, %v950
        %v960 = vor.u32 %v958, %v959
        %v961 = vshll.u32 2102212464, %v949
        %v962 = vshrl.u32 920167782, %v950
        %v963 = vor.u32 %v961, %v962
        %v964 = vshll.u32 920167782, %v949
        %v965 = vshrl.u32 1326507024, %v950
        %v966 = vor.u32 %v964, %v965
        %vm967 = vcmp.lt.s32.totalorder %v948, 1
        %vm968 = vcmp.lt.s32.totalorder %v948, 2
        %vm969 = vcmp.lt.s32.totalorder %v948, 3
        %vm970 = vcmp.lt.s32.totalorder %v948, 4
        %v971 = vsel %vm967, %v951, %v954
        %v972 = vsel %vm970, %v960, 2102212464
        %v973 = vsel %vm969, %v957, %v972
        %v974 = vsel %vm968, %v971, %v973
        %v975 = vsel %vm967, %v954, %v957
        %v976 = vsel %vm970, %v963, 920167782
        %v977 = vsel %vm969, %v960, %v976
        %v978 = vsel %vm968, %v975, %v977
        %v979 = vsel %vm967, %v957, %v960
        %v980 = vsel %vm970, %v966, 1326507024
        %v981 = vsel %vm969, %v963, %v980
        %v982 = vsel %vm968, %v979, %v981
        %v983 = vshll.u32 %v943, 8
        %v984 = vmul.u32.u64.compose %v983, %v982
        %v985 = vextract.low.u32 %v984
        %v986 = vextract.high.u32 %v984
        %v987 = vmul.u32.u64.compose %v983, %v978
        %v988 = vextract.low.u32 %v987
        %v989 = vextract.high.u32 %v987
        %v990 = vmul.u32 %v983, %v974
        %v991 = vadd.s32 %v986, %v988
        %vm992 = vc.u32 %v986, %v988
        %v993 = vadd.s32 %v989, 1
        %v994 = vsel %vm992, %v993, %v989
        %v995 = vadd.s32 %v990, %v994
        %v996 = vadd.s32 %v995, 536870912
        %v997 = vshrl.u32 %v996, 30
        %v998 = vshll.u32 %v997, 30
        %v999 = vsub.s32 %v995, %v998
        %vm1000 = vcmp.lt.s32.totalorder %v999, 0
        %v1001 = vsub.s32 0, %v999
        %v1002 = vsel %vm1000, %v1001, %v999
        %v1003 = vclz %v1002
        %v1004 = vsub.s32 %v1003, 2
        %vm1005 = vcmp.gt.s32.totalorder 0, %v1004
        %v1006 = vsel %vm1005, 0, %v1004
        %v1007 = vsub.s32 32, %v1006
        %v1008 = vshll.u32 %v999, %v1006
        %v1009 = vshrl.u32 %v991, %v1007
        %v1010 = vor.u32 %v1008, %v1009
        %v1011 = vsub.s32 4294967266, %v1006
        %v1012 = vadd.s32 %v1011, 127
        %v1013 = vshll.u32 %v1012, 23
        %v1014 = vor.u32 4788187, %v1013
        %v1015 = vand.u32 2147483647, %v1014
        %v1017 = vcvt.s32.f32 %v1010
        %v1018 = vmul.f32 %v1017, %v1015
        %v1019 = vxor.u32 %v1018, 2147483648
        %v1020 = vsel %vm937, %v1019, %v1018
        %v1021 = vsub.s32 4, %v997
        %v1022 = vsel %vm937, %v1021, %v997
        %v1023 = vsel %vm936, %v209, %v1020
        %v1024 = vsel %vm936, 0, %v1022
        %v1025 = vcosq.f32.pop %v1023
        %v1026 = vsinq.f32.pop %v1023
        %vm1027 = vweird.f32 %v209
        %v1028 = vadd.s32 %v1024, 3
        %v1029 = vand.u32 %v1028, 3
        %vm1030 = vcmp.lt.s32.totalorder %v1029, 2
        %vm1031 = vcmp.eq.s32.totalorder %v1029, 0
        %v1032 = vxor.u32 %v1026, 2147483648
        %v1033 = vsel %vm1031, %v1025, %v1032
        %vm1034 = vcmp.eq.s32.totalorder %v1029, 2
        %v1035 = vxor.u32 %v1025, 2147483648
        %v1036 = vsel %vm1034, %v1035, %v1026
        %v1037 = vsel %vm1030, %v1033, %v1036
        %v1038 = vsel %vm1027, nan, %v1037
        %v1039 = vmul.f32 %v416, %v313
        %v1040 = vmul.f32 %v830, %v726
        %v1041 = vadd.f32 %v1039, %v1040
        %v1042 = vmul.f32 %v830, %v313
        %v1043 = vmul.f32 %v416, %v726
        %v1044 = vsub.f32 %v1042, %v1043
        %v1045 = vstv %s164
        %v1046 = vmul.f32 %v1045, %v1041
        %v1047 = vstv %s155
        %v1048 = vadd.f32 %v1047, %v1046
        %v1049 = vmul.f32 %v1045, %v1044
        %v1050 = vsub.f32 %v206, %v190
        %v1051 = vmul.f32 %v1049, %v190
        %v1052 = vmul.f32 %v1051, %v192
        %v1053 = vmul.f32 %v519, %v313
        %v1054 = vmul.f32 %v934, %v726
        %v1055 = vadd.f32 %v1053, %v1054
        %v1056 = vmul.f32 %v934, %v313
        %v1057 = vmul.f32 %v519, %v726
        %v1058 = vsub.f32 %v1056, %v1057
        %v1059 = vstv %s165
        %v1060 = vmul.f32 %v1059, %v1055
        %v1061 = vstv %s156
        %v1062 = vadd.f32 %v1061, %v1060
        %v1063 = vmul.f32 %v1059, %v1058
        %v1064 = vsub.f32 %v208, %v190
        %v1065 = vmul.f32 %v1063, %v190
        %v1066 = vmul.f32 %v1065, %v194
        %v1067 = vmul.f32 %v622, %v313
        %v1068 = vmul.f32 %v1038, %v726
        %v1069 = vadd.f32 %v1067, %v1068
        %v1070 = vmul.f32 %v1038, %v313
        %v1071 = vmul.f32 %v622, %v726
        %v1072 = vsub.f32 %v1070, %v1071
        %v1073 = vstv %s166
        %v1074 = vmul.f32 %v1073, %v1069
        %v1075 = vstv %s157
        %v1076 = vadd.f32 %v1075, %v1074
        %v1077 = vmul.f32 %v1073, %v1072
        %v1078 = vsub.f32 %v210, %v190
        %v1079 = vmul.f32 %v1077, %v190
        %v1080 = vmul.f32 %v1079, %v196
        %v1081 = vmul.f32 %v519, %v416
        %v1082 = vmul.f32 %v934, %v830
        %v1083 = vadd.f32 %v1081, %v1082
        %v1084 = vmul.f32 %v934, %v416
        %v1085 = vmul.f32 %v519, %v830
        %v1086 = vsub.f32 %v1084, %v1085
        %v1087 = vstv %s167
        %v1088 = vmul.f32 %v1087, %v1083
        %v1089 = vstv %s159
        %v1090 = vadd.f32 %v1089, %v1088
        %v1091 = vmul.f32 %v1087, %v1086
        %v1092 = vsub.f32 %v208, %v206
        %v1093 = vmul.f32 %v1091, %v192
        %v1094 = vmul.f32 %v1093, %v194
        %v1095 = vmul.f32 %v622, %v416
        %v1096 = vmul.f32 %v1038, %v830
        %v1097 = vadd.f32 %v1095, %v1096
        %v1098 = vmul.f32 %v1038, %v416
        %v1099 = vmul.f32 %v622, %v830
        %v1100 = vsub.f32 %v1098, %v1099
        %v1101 = vstv %s168
        %v1102 = vmul.f32 %v1101, %v1097
        %v1103 = vstv %s160
        %v1104 = vadd.f32 %v1103, %v1102
        %v1105 = vmul.f32 %v1101, %v1100
        %v1106 = vsub.f32 %v210, %v206
        %v1107 = vmul.f32 %v1105, %v192
        %v1108 = vmul.f32 %v1107, %v196
        %v1109 = vmul.f32 %v622, %v519
        %v1110 = vmul.f32 %v1038, %v934
        %v1111 = vadd.f32 %v1109, %v1110
        %v1112 = vmul.f32 %v1038, %v519
        %v1113 = vmul.f32 %v622, %v934
        %v1114 = vsub.f32 %v1112, %v1113
        %v1115 = vstv %s169
        %v1116 = vmul.f32 %v1115, %v1111
        %v1117 = vstv %s162
        %v1118 = vadd.f32 %v1117, %v1116
        %v1119 = vmul.f32 %v1115, %v1114
        %v1120 = vsub.f32 %v210, %v208
        %v1121 = vmul.f32 %v1119, %v194
        %v1122 = vmul.f32 %v1121, %v196
        %v1123 = vmul.f32 %v1049, %v192
        %v1124 = vmul.f32 %v1123, %v1050
        %v1125 = vmul.f32 %v1063, %v194
        %v1126 = vmul.f32 %v1125, %v1064
        %v1127 = vadd.f32 %v1124, %v1126
        %v1128 = vmul.f32 %v1077, %v196
        %v1129 = vmul.f32 %v1128, %v1078
        %v1130 = vadd.f32 %v1127, %v1129
        %v1131 = vsub.f32 0.0, %v1130
        %v1132 = vmul.f32 %v1051, %v1050
        %v1133 = vmul.f32 %v1091, %v194
        %v1134 = vmul.f32 %v1133, %v1092
        %v1135 = vadd.f32 %v1132, %v1134
        %v1136 = vmul.f32 %v1105, %v196
        %v1137 = vmul.f32 %v1136, %v1106
        %v1138 = vadd.f32 %v1135, %v1137
        %v1139 = vsub.f32 0.0, %v1138
        %v1140 = vadd.f32 %v1139, %v1052
        %v1141 = vadd.f32 %v1140, %v1066
        %v1142 = vadd.f32 %v1141, %v1080
        %v1143 = vmul.f32 %v1065, %v1064
        %v1144 = vmul.f32 %v1093, %v1092
        %v1145 = vadd.f32 %v1143, %v1144
        %v1146 = vmul.f32 %v1119, %v196
        %v1147 = vmul.f32 %v1146, %v1120
        %v1148 = vadd.f32 %v1145, %v1147
        %v1149 = vsub.f32 0.0, %v1148
        %v1150 = vadd.f32 %v1149, %v1066
        %v1151 = vadd.f32 %v1150, %v1080
        %v1152 = vadd.f32 %v1151, %v1094
        %v1153 = vadd.f32 %v1152, %v1108
        %v1154 = vmul.f32 %v1079, %v1078
        %v1155 = vmul.f32 %v1107, %v1106
        %v1156 = vadd.f32 %v1154, %v1155
        %v1157 = vmul.f32 %v1121, %v1120
        %v1158 = vadd.f32 %v1156, %v1157
        %v1159 = vsub.f32 0.0, %v1158
        %v1160 = vadd.f32 %v1159, %v1080
        %v1161 = vadd.f32 %v1160, %v1108
        %v1162 = vadd.f32 %v1161, %v1122
        %v1163 = vstv %s173
        %v1164 = vmul.f32 %v1163, %v1038
        %v1165 = vstv %s172
        %v1166 = vmul.f32 %v1165, %v934
        %v1167 = vadd.f32 %v1164, %v1166
        %v1168 = vstv %s171
        %v1169 = vmul.f32 %v1168, %v830
        %v1170 = vadd.f32 %v1167, %v1169
        %v1171 = vstv %s170
        %v1172 = vmul.f32 %v1171, %v726
        %v1173 = vadd.f32 %v1170, %v1172
        %v1174 = vstv %s174
        %v1175 = vmul.f32 %v1174, %v198
        %v1176 = vsub.f32 %v1175, %v1131
        %v1177 = vsub.f32 %v1176, %v1173
        %v1178 = vstv %s175
        %v1179 = vmul.f32 %v1178, %v200
        %v1180 = vsub.f32 %v1179, %v1142
        %v1181 = vsub.f32 %v1180, %v1170
        %v1182 = vstv %s176
        %v1183 = vmul.f32 %v1182, %v202
        %v1184 = vsub.f32 %v1183, %v1153
        %v1185 = vsub.f32 %v1184, %v1167
        %v1186 = vstv %s177
        %v1187 = vmul.f32 %v1186, %v204
        %v1188 = vsub.f32 %v1187, %v1162
        %v1189 = vsub.f32 %v1188, %v1164
        %v1190 = vrcp.pop %v178
        %v1191 = vmul.f32 %v178, %v1190
        %v1192 = vsub.f32 2.0, %v1191
        %v1193 = vmul.f32 %v1190, %v1192
        %v1194 = vmul.f32 %v1048, %v1193
        %v1195 = vmul.f32 %v1062, %v1193
        %v1196 = vmul.f32 %v1076, %v1193
        %v1197 = vmul.f32 %v1194, %v1048
        %v1198 = vsub.f32 %v179, %v1197
        %v1199 = vrcp.pop %v1198
        %v1200 = vmul.f32 %v1198, %v1199
        %v1201 = vsub.f32 2.0, %v1200
        %v1202 = vmul.f32 %v1199, %v1201
        %v1203 = vmul.f32 %v1195, %v1048
        %v1204 = vsub.f32 %v1090, %v1203
        %v1205 = vmul.f32 %v1204, %v1202
        %v1206 = vmul.f32 %v1196, %v1048
        %v1207 = vsub.f32 %v1104, %v1206
        %v1208 = vmul.f32 %v1207, %v1202
        %v1209 = vmul.f32 %v1195, %v1062
        %v1210 = vsub.f32 %v180, %v1209
        %v1211 = vmul.f32 %v1205, %v1204
        %v1212 = vsub.f32 %v1210, %v1211
        %v1213 = vrcp.pop %v1212
        %v1214 = vmul.f32 %v1212, %v1213
        %v1215 = vsub.f32 2.0, %v1214
        %v1216 = vmul.f32 %v1213, %v1215
        %v1217 = vmul.f32 %v1196, %v1062
        %v1218 = vsub.f32 %v1118, %v1217
        %v1219 = vmul.f32 %v1208, %v1204
        %v1220 = vsub.f32 %v1218, %v1219
        %v1221 = vmul.f32 %v1220, %v1216
        %v1222 = vmul.f32 %v1196, %v1076
        %v1223 = vsub.f32 %v181, %v1222
        %v1224 = vmul.f32 %v1208, %v1207
        %v1225 = vsub.f32 %v1223, %v1224
        %v1226 = vmul.f32 %v1221, %v1220
        %v1227 = vsub.f32 %v1225, %v1226
        %v1228 = vrcp.pop %v1227
        %v1229 = vmul.f32 %v1227, %v1228
        %v1230 = vsub.f32 2.0, %v1229
        %v1231 = vmul.f32 %v1228, %v1230
        %v1232 = vmul.f32 %v1194, %v1177
        %v1233 = vsub.f32 %v1181, %v1232
        %v1234 = vmul.f32 %v1195, %v1177
        %v1235 = vsub.f32 %v1185, %v1234
        %v1236 = vmul.f32 %v1205, %v1233
        %v1237 = vsub.f32 %v1235, %v1236
        %v1238 = vmul.f32 %v1196, %v1177
        %v1239 = vsub.f32 %v1189, %v1238
        %v1240 = vmul.f32 %v1208, %v1233
        %v1241 = vsub.f32 %v1239, %v1240
        %v1242 = vmul.f32 %v1221, %v1237
        %v1243 = vsub.f32 %v1241, %v1242
        %v1244 = vmul.f32 %v1243, %v1231
        %v1245 = vmul.f32 %v1237, %v1216
        %v1246 = vmul.f32 %v1221, %v1244
        %v1247 = vsub.f32 %v1245, %v1246
        %v1248 = vmul.f32 %v1233, %v1202
        %v1249 = vmul.f32 %v1205, %v1247
        %v1250 = vsub.f32 %v1248, %v1249
        %v1251 = vmul.f32 %v1208, %v1244
        %v1252 = vsub.f32 %v1250, %v1251
        %v1253 = vmul.f32 %v1177, %v1193
        %v1254 = vmul.f32 %v1194, %v1252
        %v1255 = vsub.f32 %v1253, %v1254
        %v1256 = vmul.f32 %v1195, %v1247
        %v1257 = vsub.f32 %v1255, %v1256
        %v1258 = vmul.f32 %v1196, %v1244
        %v1259 = vsub.f32 %v1257, %v1258
        %1260 = vst [vmem:[%s153] sm:$0xff] %v1259
        %s1261 = scalar_lea.vmem %s153, 8 [#allocation10]
        %1262 = vst [vmem:[%s1261] sm:$0xff] %v1252
        %s1263 = scalar_lea.vmem %s153, 16 [#allocation10]
        %1264 = vst [vmem:[%s1263] sm:$0xff] %v1247
        %s1265 = scalar_lea.vmem %s153, 24 [#allocation10]
        %1266 = vst [vmem:[%s1265] sm:$0xff] %v1244
        %s1267 = sand.u32 %s72, 1
        %s1268 = scalar_lea.sflag [#allocation9], %s1267
        %s1269 = sand.u32 %s72, 1
        %s1270 = smul.addr %s1269, 32
        %s1271 = scalar_lea.vmem [#allocation10], %s1270
        // Predicated region
        $region29: #{tpu_custom_call.1} parent=23 // pred_check
          %p1272 = pneg %p82
        $region30: #{tpu_custom_call.1} parent=23 // pred_check_branch
          %1274 = sbr.rel (%p1272) target = $region32
        $region31: #{tpu_custom_call.1} parent=23 // pred_region
          %s1276 = ssub.s32 512, 512
          %1277 = vsyncadd %s1268, %s1276
          %s1278 = smul.addr %s38, 128
          %s1279 = scalar_lea.hbm %s5, %s1278
          %s1280 = sshll.u32 %s1271, 4
          %s1281 = int_to_ptr.vmem [resolvable:$true] %s1280
          %1286 = dma.vmem_to_hbm [thread:$0]  %s1281, 512, %s1279, %s1268, 128, 256, 8
        $region32: #{tpu_custom_call.1} parent=23 // pred_fallthru
          _
      $region24: #{tpu_custom_call.1} parent=5 // pred_fallthru
        _
      %p1287 = scmp.le.s32.totalorder 2, %s33
      // Predicated region
      $region33: #{tpu_custom_call.1} parent=5 // pred_check
        %p1288 = pneg %p1287
      $region34: #{tpu_custom_call.1} parent=5 // pred_check_branch
        %1290 = sbr.rel (%p1288) target = $region36
      $region35: #{tpu_custom_call.1} parent=5 // pred_region
        %s1291 = ssub.s32 %s33, 2
        // Predicated region
        $region37: #{tpu_custom_call.1} parent=35 // pred_check
          %p1292 = pneg %p88
        $region38: #{tpu_custom_call.1} parent=35 // pred_check_branch
          %1294 = sbr.rel (%p1292) target = $region40
        $region39: #{tpu_custom_call.1} parent=35 // pred_region
          %s1295 = sand.u32 %s73, 1
          %s1296 = scalar_lea.sflag [#allocation9], %s1295
          %s1297 = sand.u32 %s73, 1
          %s1298 = smul.addr %s1297, 32
          %s1299 = scalar_lea.vmem [#allocation10], %s1298
          %1300 = dma.done %s1296, 512
        $region40: #{tpu_custom_call.1} parent=35 // pred_fallthru
          _
      $region36: #{tpu_custom_call.1} parent=5 // pred_fallthru
        _
    $region6: #{tpu_custom_call.1} parent=1 // loop_footer
      %s37 = sadd.s32 1, %s33
    $region7: #{tpu_custom_call.1} parent=1 // loop_footer_branch
      %32 = sbr.rel target = $region3
    $region8: #{tpu_custom_call.1} parent=1 // loop_exit
      _
    %1301 = vsyncpa [#allocation8], 1
    %s1302 = scalar_lea.sflag [#allocation8], 1
    %1303 = vsyncpa %s1302, 1
    %1304 = vsyncpa [#allocation9], 1
    %s1305 = scalar_lea.sflag [#allocation9], 1
    %1306 = vsyncpa %s1305, 1

</llo_original>
